<compile_context>
chip_gen: v7x
topology: tpu7x:2x2x1
jax: 0.10.0
libtpu: 0.0.40
codegen_flags: <defaults>
</compile_context>

<pallas_src>
import functools

import jax
import jax.numpy as jnp
import numpy as np
from jax import lax
from jax.experimental import pallas as pl
from jax.experimental.pallas import tpu as pltpu

_HEAD = 16  # fixed by the module (torch.chunk(x, 16, dim=1), f1 = Conv2d(16,1,1))


def _bilinear_matrix(in_size, out_size):
    """(out_size, in_size) bilinear resize weights, align_corners=False."""
    r = np.zeros((out_size, in_size), np.float32)
    scale = in_size / out_size
    for o in range(out_size):
        src = max((o + 0.5) * scale - 0.5, 0.0)
        i0 = min(int(np.floor(src)), in_size - 1)
        i1 = min(i0 + 1, in_size - 1)
        l1 = src - i0
        r[o, i0] += 1.0 - l1
        r[o, i1] += l1
    return r


def _la_kernel(x_ref, pmaskT_ref, addm_ref, w1c_ref, whp_ref, u_ref, b1_ref,
               o_ref, hm_s, pmax_s, *, C, cpg, Bt, rW):
    """One grid step = Bt images of a (Bt*C, HW) lane-flattened slab."""
    f32 = jnp.float32
    inv_den = 1.0 / (4.0 * cpg)            # mean divisor: cpg channels * 2x2

    b1 = b1_ref[0]                          # f1 bias (SMEM scalar)
    w1c = w1c_ref[...]                      # (C, 1)  f1 weight per channel
    w1h = whp_ref[:, 0:1]                   # (16, 1) f1 weight per head
    aw = whp_ref[:, 1:2]                    # (16, 1) vw0 * f2.weight
    cw = whp_ref[:, 2:3]                    # (16, 1) vw1 * f2.weight
    dw = whp_ref[:, 3:4]                    # (16, 1) (vw0+vw1)*f2.bias + v.bias
    pmT = pmaskT_ref[...]                   # (rW, 16) 0/1 patch masks (for MXU)
    addm = addm_ref[...]                    # (16, rW) additive max masks
    ups = u_ref[...]                        # (16, HW) bilinear upsample weights
    out_f32 = jnp.dtype(o_ref.dtype) == jnp.dtype(jnp.float32)

    def process(bi):
        base = bi * C
        if not isinstance(base, int):
            base = pl.multiple_of(base, C)

        # Only the top-left 8x8 region participates in pooling -> lanes [0, 8W).
        region = x_ref[pl.ds(base, C), pl.ds(0, rW)].astype(f32)     # (C, rW)

        # ---- mean branch: 2x2 patch sums on the MXU, f1 folded into a
        # weighted channel (sublane) reduce.
        psum = jnp.dot(region, pmT, preferred_element_type=f32)      # (C, 16)
        pre_mean = (jnp.sum(w1c * psum, axis=0, keepdims=True)
                    * inv_den + b1)                                   # (1, 16)

        # ---- max branch: per-head channel max (sublane), then per-patch lane
        # max with an additive mask, then f1 (weighted sublane sum).
        for p in range(_HEAD):
            hm_s[p:p + 1, :] = jnp.max(region[p * cpg:(p + 1) * cpg, :],
                                       axis=0, keepdims=True)
        hm = hm_s[...]                                                # (16, rW)
        for q in range(_HEAD):
            pmax_s[:, q:q + 1] = jnp.max(hm + addm[q:q + 1, :],
                                         axis=1, keepdims=True)
        pre_max = jnp.sum(w1h * pmax_s[...], axis=0, keepdims=True) + b1

        # ---- ReLU, f2 and v (all folded host-side into aw/cw/dw).
        rm = jnp.maximum(pre_mean, 0.0)
        rx = jnp.maximum(pre_max, 0.0)
        fusion = aw * rm + cw * rx + dw                 # (16 heads, 16 cells)

        # ---- bilinear 4x4 -> HxW upsample on the MXU, then 1 + sigmoid.
        attn = jnp.dot(fusion, ups, preferred_element_type=f32)      # (16, HW)
        gate1 = 1.0 + pl.reciprocal(1.0 + jnp.exp(-attn), approx=True)

        # ---- gated residual: out = x * (1 + sigmoid(attn_head)) per head.
        # x rows are re-loaded from VMEM per head (no whole-slab f32 live set).
        for p in range(_HEAD):
            r0 = base + p * cpg
            if not isinstance(r0, int):
                r0 = pl.multiple_of(r0, cpg)
            xr = x_ref[pl.ds(r0, cpg), :]
            g = gate1[p:p + 1, :]
            if out_f32:
                o_ref[pl.ds(r0, cpg), :] = xr.astype(f32) * g
            else:
                # bf16-friendly path: keep the bandwidth-dominant multiply in
                # the input dtype (v6e/v7x VALUs support bf16).
                o_ref[pl.ds(r0, cpg), :] = xr * g.astype(o_ref.dtype)

    if Bt == 1:
        process(0)
    else:
        def body(bi, carry):
            process(bi)
            return carry
        lax.fori_loop(0, Bt, body, 0)


def _pick_block_batch(B, C, HW, itemsize, vmem_cap, requested=None):
    if requested is not None:
        bt = max(1, min(requested, B))
    else:
        # Per double-buffered slab budget: ~vmem/16 (2x in + 2x out buffers
        # plus f32 working set stay well under the scoped limit, incl. v7x).
        slab_budget = max(1 << 20, vmem_cap // 16)
        bt = max(1, slab_budget // max(1, C * HW * itemsize))
        bt = min(bt, max(1, B // 2))   # keep >=2 grid steps (megacore / 2 TCs)
        bt = min(bt, B)
    while bt > 1 and B % bt:
        bt -= 1
    return max(1, bt)


def la_forward(x, params, *, block_batch=None):
    """x: [B, C, H, W] (C % 16 == 0, H >= 8, W >= 8). params = (w1,b1,w2,b2,vw,vb)."""
    w1, b1, w2, b2, vw, vb = params
    B, C, H, W = x.shape
    assert C % _HEAD == 0, "C must be divisible by 16"
    assert H >= 8 and W >= 8, "module pools a fixed top-left 8x8 region"
    cpg = C // _HEAD
    HW = H * W
    rW = 8 * W                       # pooled region = rows 0..7 -> lanes [0, 8W)

    # Patch masks over the top-left 8x8 region only: patch q = i*4 + j.
    pmask_r = np.zeros((_HEAD, rW), np.float32)
    for i in range(4):
        for j in range(4):
            q = i * 4 + j
            for di in range(2):
                for dj in range(2):
                    pmask_r[q, (2 * i + di) * W + (2 * j + dj)] = 1.0
    pmaskT = np.ascontiguousarray(pmask_r.T)                      # (rW, 16)
    addm = np.where(pmask_r > 0.5, 0.0, -1e30).astype(np.float32)  # (16, rW)

    # Bilinear 4x4 -> HxW upsample weights (align_corners=False), flattened.
    rh = _bilinear_matrix(4, H)                                    # (H, 4)
    rw_ = _bilinear_matrix(4, W)                                   # (W, 4)
    u = np.einsum("ha,wb->abhw", rh, rw_).reshape(_HEAD, HW).astype(np.float32)

    # Host-side parameter folding.
    w1f = jnp.asarray(w1, jnp.float32)
    w2f = jnp.asarray(w2, jnp.float32)
    b2f = jnp.asarray(b2, jnp.float32)
    vwf = jnp.asarray(vw, jnp.float32)
    vbf = jnp.asarray(vb, jnp.float32)
    w1c = jnp.repeat(w1f, cpg).reshape(C, 1)                       # per channel
    whp = jnp.stack([w1f, vwf[0] * w2f, vwf[1] * w2f,
                     (vwf[0] + vwf[1]) * b2f + vbf], axis=1)       # (16, 4)
    b1s = jnp.asarray(b1, jnp.float32).reshape(1)                  # SMEM scalar

    itemsize = jnp.dtype(x.dtype).itemsize
    try:
        info = pltpu.get_tpu_info()
        vmem_cap = int(getattr(info, "vmem_capacity_bytes", 0)) or (64 << 20)
    except Exception:
        vmem_cap = 64 << 20          # conservative (v7x per-TC) fallback
    Bt = _pick_block_batch(B, C, HW, itemsize, vmem_cap, block_batch)
    grid = (B // Bt,)
    vmem_limit = max(32 << 20, min((vmem_cap * 3) // 4, 96 << 20))

    x2d = x.reshape(B * C, HW)
    kernel = functools.partial(_la_kernel, C=C, cpg=cpg, Bt=Bt, rW=rW)

    out = pl.pallas_call(
        kernel,
        out_shape=jax.ShapeDtypeStruct((B * C, HW), x.dtype),
        grid_spec=pltpu.PrefetchScalarGridSpec(
            num_scalar_prefetch=0,
            grid=grid,
            in_specs=[
                pl.BlockSpec((Bt * C, HW), lambda b: (b, 0)),      # x slab
                pl.BlockSpec((rW, _HEAD), lambda b: (0, 0)),       # sum masks^T
                pl.BlockSpec((_HEAD, rW), lambda b: (0, 0)),       # max add-masks
                pl.BlockSpec((C, 1), lambda b: (0, 0)),            # f1 w / channel
                pl.BlockSpec((_HEAD, 4), lambda b: (0, 0)),        # folded head params
                pl.BlockSpec((_HEAD, HW), lambda b: (0, 0)),       # upsample weights
                pl.BlockSpec(memory_space=pltpu.MemorySpace.SMEM), # f1 bias scalar
            ],
            out_specs=pl.BlockSpec((Bt * C, HW), lambda b: (b, 0)),
            scratch_shapes=[
                pltpu.VMEM((_HEAD, rW), jnp.float32),              # per-head row max
                pltpu.VMEM((_HEAD, _HEAD), jnp.float32),           # head x patch max
            ],
        ),
        compiler_params=pltpu.CompilerParams(
            dimension_semantics=("parallel",),
            vmem_limit_bytes=int(vmem_limit)),
        cost_estimate=pl.CostEstimate(
            flops=int(B * (2 * C * rW * _HEAD + 2 * _HEAD * _HEAD * HW
                           + 4 * C * HW)),
            transcendentals=int(B * _HEAD * HW),
            bytes_accessed=int(2 * B * C * HW * itemsize)),
    )(x2d, jnp.asarray(pmaskT), jnp.asarray(addm), w1c, whp, jnp.asarray(u),
      b1s)

    return out.reshape(B, C, H, W)


def _reference(x, params):
    """Pure-JAX mirror of the (consistent reading of the) PyTorch LA.forward."""
    w1, b1, w2, b2, vw, vb = params
    B, C, H, W = x.shape
    cpg = C // _HEAD
    xf = x.astype(jnp.float32)
    xc = xf.reshape(B, _HEAD, cpg, H, W)
    region = xc[:, :, :, 0:8, 0:8]
    patches = region.reshape(B, _HEAD, cpg, 4, 2, 4, 2)
    means = jnp.mean(patches, axis=(2, 4, 6))              # (B,16,4,4)
    maxs = jnp.max(patches, axis=(2, 4, 6))                # (B,16,4,4)

    def f12(t):
        h1 = jnp.sum(t * w1[None, :, None, None], axis=1) + b1     # (B,4,4)
        h1 = jnp.maximum(h1, 0.0)
        return (w2[None, :, None, None] * h1[:, None, :, :]
                + b2[None, :, None, None])                         # (B,16,4,4)

    fusion = vw[0] * f12(means) + vw[1] * f12(maxs) + vb           # (B,16,4,4)

    rh = jnp.asarray(_bilinear_matrix(4, H))                       # (H,4)
    rw = jnp.asarray(_bilinear_matrix(4, W))                       # (W,4)
    t1 = jnp.sum(fusion[:, :, None, :, :] * rh[None, None, :, :, None], axis=3)
    up = jnp.sum(t1[:, :, :, None, :] * rw[None, None, None, :, :], axis=4)

    gate = 1.0 / (1.0 + jnp.exp(-up))
    out = xc * gate[:, :, None, :, :]
    return (out.reshape(B, C, H, W) + xf).astype(x.dtype)


if __name__ == "__main__":
    # Small shapes consistent with the module: C divisible by 16, H = W = 8
    # (the pooling grid covers exactly an 8x8 region).
    B, C, H, W = 4, 32, 8, 8

    key = jax.random.PRNGKey(0)
    kx, k1, kb1, k2, kb2, kv, kvb = jax.random.split(key, 7)
    x = jax.random.normal(kx, (B, C, H, W), dtype=jnp.float32)
    w1 = jax.random.normal(k1, (_HEAD,), dtype=jnp.float32) * 0.25   # f1.weight
    b1 = jax.random.normal(kb1, (), dtype=jnp.float32) * 0.1         # f1.bias
    w2 = jax.random.normal(k2, (_HEAD,), dtype=jnp.float32) * 0.25   # f2.weight
    b2 = jax.random.normal(kb2, (_HEAD,), dtype=jnp.float32) * 0.1   # f2.bias
    vw = jax.random.normal(kv, (2,), dtype=jnp.float32) * 0.5        # v.weight
    vb = jax.random.normal(kvb, (), dtype=jnp.float32) * 0.1         # v.bias
    params = (w1, b1, w2, b2, vw, vb)

    out = la_forward(x, params)      # auto block-batch -> 2 grid steps of 2
    jax.block_until_ready(out)

    ref = _reference(x, params)
    assert out.shape == (B, C, H, W)
    # Tolerance accounts for MXU bf16-pass rounding in the two small matmuls
    # and the EUP approx reciprocal; everything else is exact f32.
    err = float(jnp.max(jnp.abs(out - ref)))
    assert jnp.allclose(out, ref, atol=2e-3, rtol=2e-3), err
    print("KERNEL_OK")
</pallas_src>

<mosaic_0001>
module attributes {stable_mosaic.version = 11 : i64} {
  func.func @_la_kernel(%arg0: i32, %arg1: memref<64x64xf32, #tpu.memory_space<vmem>>, %arg2: memref<64x16xf32, #tpu.memory_space<vmem>>, %arg3: memref<16x64xf32, #tpu.memory_space<vmem>>, %arg4: memref<32x1xf32, #tpu.memory_space<vmem>>, %arg5: memref<16x4xf32, #tpu.memory_space<vmem>>, %arg6: memref<16x64xf32, #tpu.memory_space<vmem>>, %arg7: memref<1xf32, #tpu.memory_space<smem>>, %arg8: memref<64x64xf32, #tpu.memory_space<vmem>>, %arg9: memref<16x64xf32, #tpu.memory_space<vmem>>, %arg10: memref<16x16xf32, #tpu.memory_space<vmem>>) attributes {dimension_semantics = [#tpu.dimension_semantics<parallel>], iteration_bounds = array<i64: 2>, scalar_prefetch = 0 : i64, scratch_operands = 2 : i64, tpu.core_type = #tpu.core_type<tc>, window_params = [{transform_indices = @transform_0, window_bounds = array<i64: 64, 64>}, {pipeline_mode = #tpu.pipeline_mode<synchronous>, transform_indices = @transform_1, window_bounds = array<i64: 64, 16>}, {pipeline_mode = #tpu.pipeline_mode<synchronous>, transform_indices = @transform_2, window_bounds = array<i64: 16, 64>}, {pipeline_mode = #tpu.pipeline_mode<synchronous>, transform_indices = @transform_3, window_bounds = array<i64: 32, 1>}, {pipeline_mode = #tpu.pipeline_mode<synchronous>, transform_indices = @transform_4, window_bounds = array<i64: 16, 4>}, {pipeline_mode = #tpu.pipeline_mode<synchronous>, transform_indices = @transform_5, window_bounds = array<i64: 16, 64>}, {transform_indices = @transform_6, window_bounds = array<i64: 1>}, {transform_indices = @transform_7, window_bounds = array<i64: 64, 64>}]} {
    %c0 = arith.constant 0 : index
    %0 = memref.load %arg7[%c0] : memref<1xf32, #tpu.memory_space<smem>>
    %c0_0 = arith.constant 0 : index
    %c0_1 = arith.constant 0 : index
    %1 = vector.load %arg4[%c0_0, %c0_1] : memref<32x1xf32, #tpu.memory_space<vmem>>, vector<32x1xf32>
    %c0_2 = arith.constant 0 : index
    %c0_3 = arith.constant 0 : index
    %2 = vector.load %arg5[%c0_2, %c0_3] : memref<16x4xf32, #tpu.memory_space<vmem>>, vector<16x1xf32>
    %c0_4 = arith.constant 0 : index
    %c1 = arith.constant 1 : index
    %3 = vector.load %arg5[%c0_4, %c1] : memref<16x4xf32, #tpu.memory_space<vmem>>, vector<16x1xf32>
    %c0_5 = arith.constant 0 : index
    %c2 = arith.constant 2 : index
    %4 = vector.load %arg5[%c0_5, %c2] : memref<16x4xf32, #tpu.memory_space<vmem>>, vector<16x1xf32>
    %c0_6 = arith.constant 0 : index
    %c3 = arith.constant 3 : index
    %5 = vector.load %arg5[%c0_6, %c3] : memref<16x4xf32, #tpu.memory_space<vmem>>, vector<16x1xf32>
    %c0_7 = arith.constant 0 : index
    %c0_8 = arith.constant 0 : index
    %6 = vector.load %arg2[%c0_7, %c0_8] : memref<64x16xf32, #tpu.memory_space<vmem>>, vector<64x16xf32>
    %c0_9 = arith.constant 0 : index
    %c0_10 = arith.constant 0 : index
    %7 = vector.load %arg3[%c0_9, %c0_10] : memref<16x64xf32, #tpu.memory_space<vmem>>, vector<16x64xf32>
    %c0_11 = arith.constant 0 : index
    %c0_12 = arith.constant 0 : index
    %8 = vector.load %arg6[%c0_11, %c0_12] : memref<16x64xf32, #tpu.memory_space<vmem>>, vector<16x64xf32>
    %c0_i32 = arith.constant 0 : i32
    %c2_i32 = arith.constant 2 : i32
    %9 = arith.addi %c0_i32, %c2_i32 : i32
    %c1_i32 = arith.constant 1 : i32
    scf.for %arg11 = %c0_i32 to %9 step %c1_i32  : i32 {
      %c32_i32 = arith.constant 32 : i32
      %10 = arith.muli %arg11, %c32_i32 : i32
      %11 = tpu.assume_multiple %10, 32 : i32
      %12 = arith.index_cast %11 : i32 to index
      %c0_14 = arith.constant 0 : index
      %13 = vector.load %arg1[%12, %c0_14] : memref<64x64xf32, #tpu.memory_space<vmem>>, vector<32x64xf32>
      %cst = arith.constant dense<0.000000e+00> : vector<32x16xf32>
      %14 = tpu.matmul %13, %6, %cst {dimension_numbers = #tpu.dot_dimension_numbers<[1], [0], [0], [1], [0, 0, 1, 1], [], []>} : vector<32x64xf32>, vector<64x16xf32>, vector<32x16xf32> -> vector<32x16xf32>
      %15 = vector.broadcast %1 : vector<32x1xf32> to vector<32x16xf32>
      %16 = arith.mulf %15, %14 : vector<32x16xf32>
      %cst_15 = arith.constant dense<0.000000e+00> : vector<16xf32>
      %17 = vector.multi_reduction <add>, %16, %cst_15 [0] : vector<32x16xf32> to vector<16xf32>
      %18 = vector.shape_cast %17 : vector<16xf32> to vector<1x16xf32>
      %cst_16 = arith.constant 1.250000e-01 : f32
      %19 = vector.broadcast %cst_16 : f32 to vector<1x16xf32>
      %20 = arith.mulf %18, %19 : vector<1x16xf32>
      %21 = vector.broadcast %0 : f32 to vector<1x16xf32>
      %22 = arith.addf %20, %21 : vector<1x16xf32>
      %23 = vector.extract_strided_slice %13 {offsets = [0, 0], sizes = [2, 64], strides = [1, 1]} : vector<32x64xf32> to vector<2x64xf32>
      %cst_17 = arith.constant dense<0xFF800000> : vector<64xf32>
      %24 = vector.multi_reduction <maximumf>, %23, %cst_17 [0] : vector<2x64xf32> to vector<64xf32>
      %25 = vector.shape_cast %24 : vector<64xf32> to vector<1x64xf32>
      %c0_18 = arith.constant 0 : index
      %c0_19 = arith.constant 0 : index
      %26 = vector.load %arg9[%c0_18, %c0_19] : memref<16x64xf32, #tpu.memory_space<vmem>>, vector<1x64xf32>
      tpu.vector_store %arg9[%c0_18, %c0_19], %25 {strides = array<i32>} : memref<16x64xf32, #tpu.memory_space<vmem>>, vector<1x64xf32>,
      %27 = vector.extract_strided_slice %13 {offsets = [2, 0], sizes = [2, 64], strides = [1, 1]} : vector<32x64xf32> to vector<2x64xf32>
      %cst_20 = arith.constant dense<0xFF800000> : vector<64xf32>
      %28 = vector.multi_reduction <maximumf>, %27, %cst_20 [0] : vector<2x64xf32> to vector<64xf32>
      %29 = vector.shape_cast %28 : vector<64xf32> to vector<1x64xf32>
      %c1_21 = arith.constant 1 : index
      %c0_22 = arith.constant 0 : index
      %30 = vector.load %arg9[%c1_21, %c0_22] : memref<16x64xf32, #tpu.memory_space<vmem>>, vector<1x64xf32>
      tpu.vector_store %arg9[%c1_21, %c0_22], %29 {strides = array<i32>} : memref<16x64xf32, #tpu.memory_space<vmem>>, vector<1x64xf32>,
      %31 = vector.extract_strided_slice %13 {offsets = [4, 0], sizes = [2, 64], strides = [1, 1]} : vector<32x64xf32> to vector<2x64xf32>
      %cst_23 = arith.constant dense<0xFF800000> : vector<64xf32>
      %32 = vector.multi_reduction <maximumf>, %31, %cst_23 [0] : vector<2x64xf32> to vector<64xf32>
      %33 = vector.shape_cast %32 : vector<64xf32> to vector<1x64xf32>
      %c2_24 = arith.constant 2 : index
      %c0_25 = arith.constant 0 : index
      %34 = vector.load %arg9[%c2_24, %c0_25] : memref<16x64xf32, #tpu.memory_space<vmem>>, vector<1x64xf32>
      tpu.vector_store %arg9[%c2_24, %c0_25], %33 {strides = array<i32>} : memref<16x64xf32, #tpu.memory_space<vmem>>, vector<1x64xf32>,
      %35 = vector.extract_strided_slice %13 {offsets = [6, 0], sizes = [2, 64], strides = [1, 1]} : vector<32x64xf32> to vector<2x64xf32>
      %cst_26 = arith.constant dense<0xFF800000> : vector<64xf32>
      %36 = vector.multi_reduction <maximumf>, %35, %cst_26 [0] : vector<2x64xf32> to vector<64xf32>
      %37 = vector.shape_cast %36 : vector<64xf32> to vector<1x64xf32>
      %c3_27 = arith.constant 3 : index
      %c0_28 = arith.constant 0 : index
      %38 = vector.load %arg9[%c3_27, %c0_28] : memref<16x64xf32, #tpu.memory_space<vmem>>, vector<1x64xf32>
      tpu.vector_store %arg9[%c3_27, %c0_28], %37 {strides = array<i32>} : memref<16x64xf32, #tpu.memory_space<vmem>>, vector<1x64xf32>,
      %39 = vector.extract_strided_slice %13 {offsets = [8, 0], sizes = [2, 64], strides = [1, 1]} : vector<32x64xf32> to vector<2x64xf32>
      %cst_29 = arith.constant dense<0xFF800000> : vector<64xf32>
      %40 = vector.multi_reduction <maximumf>, %39, %cst_29 [0] : vector<2x64xf32> to vector<64xf32>
      %41 = vector.shape_cast %40 : vector<64xf32> to vector<1x64xf32>
      %c4 = arith.constant 4 : index
      %c0_30 = arith.constant 0 : index
      %42 = vector.load %arg9[%c4, %c0_30] : memref<16x64xf32, #tpu.memory_space<vmem>>, vector<1x64xf32>
      tpu.vector_store %arg9[%c4, %c0_30], %41 {strides = array<i32>} : memref<16x64xf32, #tpu.memory_space<vmem>>, vector<1x64xf32>,
      %43 = vector.extract_strided_slice %13 {offsets = [10, 0], sizes = [2, 64], strides = [1, 1]} : vector<32x64xf32> to vector<2x64xf32>
      %cst_31 = arith.constant dense<0xFF800000> : vector<64xf32>
      %44 = vector.multi_reduction <maximumf>, %43, %cst_31 [0] : vector<2x64xf32> to vector<64xf32>
      %45 = vector.shape_cast %44 : vector<64xf32> to vector<1x64xf32>
      %c5 = arith.constant 5 : index
      %c0_32 = arith.constant 0 : index
      %46 = vector.load %arg9[%c5, %c0_32] : memref<16x64xf32, #tpu.memory_space<vmem>>, vector<1x64xf32>
      tpu.vector_store %arg9[%c5, %c0_32], %45 {strides = array<i32>} : memref<16x64xf32, #tpu.memory_space<vmem>>, vector<1x64xf32>,
      %47 = vector.extract_strided_slice %13 {offsets = [12, 0], sizes = [2, 64], strides = [1, 1]} : vector<32x64xf32> to vector<2x64xf32>
      %cst_33 = arith.constant dense<0xFF800000> : vector<64xf32>
      %48 = vector.multi_reduction <maximumf>, %47, %cst_33 [0] : vector<2x64xf32> to vector<64xf32>
      %49 = vector.shape_cast %48 : vector<64xf32> to vector<1x64xf32>
      %c6 = arith.constant 6 : index
      %c0_34 = arith.constant 0 : index
      %50 = vector.load %arg9[%c6, %c0_34] : memref<16x64xf32, #tpu.memory_space<vmem>>, vector<1x64xf32>
      tpu.vector_store %arg9[%c6, %c0_34], %49 {strides = array<i32>} : memref<16x64xf32, #tpu.memory_space<vmem>>, vector<1x64xf32>,
      %51 = vector.extract_strided_slice %13 {offsets = [14, 0], sizes = [2, 64], strides = [1, 1]} : vector<32x64xf32> to vector<2x64xf32>
      %cst_35 = arith.constant dense<0xFF800000> : vector<64xf32>
      %52 = vector.multi_reduction <maximumf>, %51, %cst_35 [0] : vector<2x64xf32> to vector<64xf32>
      %53 = vector.shape_cast %52 : vector<64xf32> to vector<1x64xf32>
      %c7 = arith.constant 7 : index
      %c0_36 = arith.constant 0 : index
      %54 = vector.load %arg9[%c7, %c0_36] : memref<16x64xf32, #tpu.memory_space<vmem>>, vector<1x64xf32>
      tpu.vector_store %arg9[%c7, %c0_36], %53 {strides = array<i32>} : memref<16x64xf32, #tpu.memory_space<vmem>>, vector<1x64xf32>,
      %55 = vector.extract_strided_slice %13 {offsets = [16, 0], sizes = [2, 64], strides = [1, 1]} : vector<32x64xf32> to vector<2x64xf32>
      %cst_37 = arith.constant dense<0xFF800000> : vector<64xf32>
      %56 = vector.multi_reduction <maximumf>, %55, %cst_37 [0] : vector<2x64xf32> to vector<64xf32>
      %57 = vector.shape_cast %56 : vector<64xf32> to vector<1x64xf32>
      %c8 = arith.constant 8 : index
      %c0_38 = arith.constant 0 : index
      %58 = vector.load %arg9[%c8, %c0_38] : memref<16x64xf32, #tpu.memory_space<vmem>>, vector<1x64xf32>
      tpu.vector_store %arg9[%c8, %c0_38], %57 {strides = array<i32>} : memref<16x64xf32, #tpu.memory_space<vmem>>, vector<1x64xf32>,
      %59 = vector.extract_strided_slice %13 {offsets = [18, 0], sizes = [2, 64], strides = [1, 1]} : vector<32x64xf32> to vector<2x64xf32>
      %cst_39 = arith.constant dense<0xFF800000> : vector<64xf32>
      %60 = vector.multi_reduction <maximumf>, %59, %cst_39 [0] : vector<2x64xf32> to vector<64xf32>
      %61 = vector.shape_cast %60 : vector<64xf32> to vector<1x64xf32>
      %c9 = arith.constant 9 : index
      %c0_40 = arith.constant 0 : index
      %62 = vector.load %arg9[%c9, %c0_40] : memref<16x64xf32, #tpu.memory_space<vmem>>, vector<1x64xf32>
      tpu.vector_store %arg9[%c9, %c0_40], %61 {strides = array<i32>} : memref<16x64xf32, #tpu.memory_space<vmem>>, vector<1x64xf32>,
      %63 = vector.extract_strided_slice %13 {offsets = [20, 0], sizes = [2, 64], strides = [1, 1]} : vector<32x64xf32> to vector<2x64xf32>
      %cst_41 = arith.constant dense<0xFF800000> : vector<64xf32>
      %64 = vector.multi_reduction <maximumf>, %63, %cst_41 [0] : vector<2x64xf32> to vector<64xf32>
      %65 = vector.shape_cast %64 : vector<64xf32> to vector<1x64xf32>
      %c10 = arith.constant 10 : index
      %c0_42 = arith.constant 0 : index
      %66 = vector.load %arg9[%c10, %c0_42] : memref<16x64xf32, #tpu.memory_space<vmem>>, vector<1x64xf32>
      tpu.vector_store %arg9[%c10, %c0_42], %65 {strides = array<i32>} : memref<16x64xf32, #tpu.memory_space<vmem>>, vector<1x64xf32>,
      %67 = vector.extract_strided_slice %13 {offsets = [22, 0], sizes = [2, 64], strides = [1, 1]} : vector<32x64xf32> to vector<2x64xf32>
      %cst_43 = arith.constant dense<0xFF800000> : vector<64xf32>
      %68 = vector.multi_reduction <maximumf>, %67, %cst_43 [0] : vector<2x64xf32> to vector<64xf32>
      %69 = vector.shape_cast %68 : vector<64xf32> to vector<1x64xf32>
      %c11 = arith.constant 11 : index
      %c0_44 = arith.constant 0 : index
      %70 = vector.load %arg9[%c11, %c0_44] : memref<16x64xf32, #tpu.memory_space<vmem>>, vector<1x64xf32>
      tpu.vector_store %arg9[%c11, %c0_44], %69 {strides = array<i32>} : memref<16x64xf32, #tpu.memory_space<vmem>>, vector<1x64xf32>,
      %71 = vector.extract_strided_slice %13 {offsets = [24, 0], sizes = [2, 64], strides = [1, 1]} : vector<32x64xf32> to vector<2x64xf32>
      %cst_45 = arith.constant dense<0xFF800000> : vector<64xf32>
      %72 = vector.multi_reduction <maximumf>, %71, %cst_45 [0] : vector<2x64xf32> to vector<64xf32>
      %73 = vector.shape_cast %72 : vector<64xf32> to vector<1x64xf32>
      %c12 = arith.constant 12 : index
      %c0_46 = arith.constant 0 : index
      %74 = vector.load %arg9[%c12, %c0_46] : memref<16x64xf32, #tpu.memory_space<vmem>>, vector<1x64xf32>
      tpu.vector_store %arg9[%c12, %c0_46], %73 {strides = array<i32>} : memref<16x64xf32, #tpu.memory_space<vmem>>, vector<1x64xf32>,
      %75 = vector.extract_strided_slice %13 {offsets = [26, 0], sizes = [2, 64], strides = [1, 1]} : vector<32x64xf32> to vector<2x64xf32>
      %cst_47 = arith.constant dense<0xFF800000> : vector<64xf32>
      %76 = vector.multi_reduction <maximumf>, %75, %cst_47 [0] : vector<2x64xf32> to vector<64xf32>
      %77 = vector.shape_cast %76 : vector<64xf32> to vector<1x64xf32>
      %c13 = arith.constant 13 : index
      %c0_48 = arith.constant 0 : index
      %78 = vector.load %arg9[%c13, %c0_48] : memref<16x64xf32, #tpu.memory_space<vmem>>, vector<1x64xf32>
      tpu.vector_store %arg9[%c13, %c0_48], %77 {strides = array<i32>} : memref<16x64xf32, #tpu.memory_space<vmem>>, vector<1x64xf32>,
      %79 = vector.extract_strided_slice %13 {offsets = [28, 0], sizes = [2, 64], strides = [1, 1]} : vector<32x64xf32> to vector<2x64xf32>
      %cst_49 = arith.constant dense<0xFF800000> : vector<64xf32>
      %80 = vector.multi_reduction <maximumf>, %79, %cst_49 [0] : vector<2x64xf32> to vector<64xf32>
      %81 = vector.shape_cast %80 : vector<64xf32> to vector<1x64xf32>
      %c14 = arith.constant 14 : index
      %c0_50 = arith.constant 0 : index
      %82 = vector.load %arg9[%c14, %c0_50] : memref<16x64xf32, #tpu.memory_space<vmem>>, vector<1x64xf32>
      tpu.vector_store %arg9[%c14, %c0_50], %81 {strides = array<i32>} : memref<16x64xf32, #tpu.memory_space<vmem>>, vector<1x64xf32>,
      %83 = vector.extract_strided_slice %13 {offsets = [30, 0], sizes = [2, 64], strides = [1, 1]} : vector<32x64xf32> to vector<2x64xf32>
      %cst_51 = arith.constant dense<0xFF800000> : vector<64xf32>
      %84 = vector.multi_reduction <maximumf>, %83, %cst_51 [0] : vector<2x64xf32> to vector<64xf32>
      %85 = vector.shape_cast %84 : vector<64xf32> to vector<1x64xf32>
      %c15 = arith.constant 15 : index
      %c0_52 = arith.constant 0 : index
      %86 = vector.load %arg9[%c15, %c0_52] : memref<16x64xf32, #tpu.memory_space<vmem>>, vector<1x64xf32>
      tpu.vector_store %arg9[%c15, %c0_52], %85 {strides = array<i32>} : memref<16x64xf32, #tpu.memory_space<vmem>>, vector<1x64xf32>,
      %c0_53 = arith.constant 0 : index
      %c0_54 = arith.constant 0 : index
      %87 = vector.load %arg9[%c0_53, %c0_54] : memref<16x64xf32, #tpu.memory_space<vmem>>, vector<16x64xf32>
      %88 = vector.extract_strided_slice %7 {offsets = [0, 0], sizes = [1, 64], strides = [1, 1]} : vector<16x64xf32> to vector<1x64xf32>
      %89 = vector.broadcast %88 : vector<1x64xf32> to vector<16x64xf32>
      %90 = arith.addf %87, %89 : vector<16x64xf32>
      %cst_55 = arith.constant dense<0xFF800000> : vector<16xf32>
      %91 = vector.multi_reduction <maximumf>, %90, %cst_55 [1] : vector<16x64xf32> to vector<16xf32>
      %92 = vector.shape_cast %91 : vector<16xf32> to vector<16x1xf32>
      %c0_56 = arith.constant 0 : index
      %c0_57 = arith.constant 0 : index
      %93 = vector.load %arg10[%c0_56, %c0_57] : memref<16x16xf32, #tpu.memory_space<vmem>>, vector<16x1xf32>
      tpu.vector_store %arg10[%c0_56, %c0_57], %92 {strides = array<i32>} : memref<16x16xf32, #tpu.memory_space<vmem>>, vector<16x1xf32>,
      %94 = vector.extract_strided_slice %7 {offsets = [1, 0], sizes = [1, 64], strides = [1, 1]} : vector<16x64xf32> to vector<1x64xf32>
      %95 = vector.broadcast %94 : vector<1x64xf32> to vector<16x64xf32>
      %96 = arith.addf %87, %95 : vector<16x64xf32>
      %cst_58 = arith.constant dense<0xFF800000> : vector<16xf32>
      %97 = vector.multi_reduction <maximumf>, %96, %cst_58 [1] : vector<16x64xf32> to vector<16xf32>
      %98 = vector.shape_cast %97 : vector<16xf32> to vector<16x1xf32>
      %c0_59 = arith.constant 0 : index
      %c1_60 = arith.constant 1 : index
      %99 = vector.load %arg10[%c0_59, %c1_60] : memref<16x16xf32, #tpu.memory_space<vmem>>, vector<16x1xf32>
      tpu.vector_store %arg10[%c0_59, %c1_60], %98 {strides = array<i32>} : memref<16x16xf32, #tpu.memory_space<vmem>>, vector<16x1xf32>,
      %100 = vector.extract_strided_slice %7 {offsets = [2, 0], sizes = [1, 64], strides = [1, 1]} : vector<16x64xf32> to vector<1x64xf32>
      %101 = vector.broadcast %100 : vector<1x64xf32> to vector<16x64xf32>
      %102 = arith.addf %87, %101 : vector<16x64xf32>
      %cst_61 = arith.constant dense<0xFF800000> : vector<16xf32>
      %103 = vector.multi_reduction <maximumf>, %102, %cst_61 [1] : vector<16x64xf32> to vector<16xf32>
      %104 = vector.shape_cast %103 : vector<16xf32> to vector<16x1xf32>
      %c0_62 = arith.constant 0 : index
      %c2_63 = arith.constant 2 : index
      %105 = vector.load %arg10[%c0_62, %c2_63] : memref<16x16xf32, #tpu.memory_space<vmem>>, vector<16x1xf32>
      tpu.vector_store %arg10[%c0_62, %c2_63], %104 {strides = array<i32>} : memref<16x16xf32, #tpu.memory_space<vmem>>, vector<16x1xf32>,
      %106 = vector.extract_strided_slice %7 {offsets = [3, 0], sizes = [1, 64], strides = [1, 1]} : vector<16x64xf32> to vector<1x64xf32>
      %107 = vector.broadcast %106 : vector<1x64xf32> to vector<16x64xf32>
      %108 = arith.addf %87, %107 : vector<16x64xf32>
      %cst_64 = arith.constant dense<0xFF800000> : vector<16xf32>
      %109 = vector.multi_reduction <maximumf>, %108, %cst_64 [1] : vector<16x64xf32> to vector<16xf32>
      %110 = vector.shape_cast %109 : vector<16xf32> to vector<16x1xf32>
      %c0_65 = arith.constant 0 : index
      %c3_66 = arith.constant 3 : index
      %111 = vector.load %arg10[%c0_65, %c3_66] : memref<16x16xf32, #tpu.memory_space<vmem>>, vector<16x1xf32>
      tpu.vector_store %arg10[%c0_65, %c3_66], %110 {strides = array<i32>} : memref<16x16xf32, #tpu.memory_space<vmem>>, vector<16x1xf32>,
      %112 = vector.extract_strided_slice %7 {offsets = [4, 0], sizes = [1, 64], strides = [1, 1]} : vector<16x64xf32> to vector<1x64xf32>
      %113 = vector.broadcast %112 : vector<1x64xf32> to vector<16x64xf32>
      %114 = arith.addf %87, %113 : vector<16x64xf32>
      %cst_67 = arith.constant dense<0xFF800000> : vector<16xf32>
      %115 = vector.multi_reduction <maximumf>, %114, %cst_67 [1] : vector<16x64xf32> to vector<16xf32>
      %116 = vector.shape_cast %115 : vector<16xf32> to vector<16x1xf32>
      %c0_68 = arith.constant 0 : index
      %c4_69 = arith.constant 4 : index
      %117 = vector.load %arg10[%c0_68, %c4_69] : memref<16x16xf32, #tpu.memory_space<vmem>>, vector<16x1xf32>
      tpu.vector_store %arg10[%c0_68, %c4_69], %116 {strides = array<i32>} : memref<16x16xf32, #tpu.memory_space<vmem>>, vector<16x1xf32>,
      %118 = vector.extract_strided_slice %7 {offsets = [5, 0], sizes = [1, 64], strides = [1, 1]} : vector<16x64xf32> to vector<1x64xf32>
      %119 = vector.broadcast %118 : vector<1x64xf32> to vector<16x64xf32>
      %120 = arith.addf %87, %119 : vector<16x64xf32>
      %cst_70 = arith.constant dense<0xFF800000> : vector<16xf32>
      %121 = vector.multi_reduction <maximumf>, %120, %cst_70 [1] : vector<16x64xf32> to vector<16xf32>
      %122 = vector.shape_cast %121 : vector<16xf32> to vector<16x1xf32>
      %c0_71 = arith.constant 0 : index
      %c5_72 = arith.constant 5 : index
      %123 = vector.load %arg10[%c0_71, %c5_72] : memref<16x16xf32, #tpu.memory_space<vmem>>, vector<16x1xf32>
      tpu.vector_store %arg10[%c0_71, %c5_72], %122 {strides = array<i32>} : memref<16x16xf32, #tpu.memory_space<vmem>>, vector<16x1xf32>,
      %124 = vector.extract_strided_slice %7 {offsets = [6, 0], sizes = [1, 64], strides = [1, 1]} : vector<16x64xf32> to vector<1x64xf32>
      %125 = vector.broadcast %124 : vector<1x64xf32> to vector<16x64xf32>
      %126 = arith.addf %87, %125 : vector<16x64xf32>
      %cst_73 = arith.constant dense<0xFF800000> : vector<16xf32>
      %127 = vector.multi_reduction <maximumf>, %126, %cst_73 [1] : vector<16x64xf32> to vector<16xf32>
      %128 = vector.shape_cast %127 : vector<16xf32> to vector<16x1xf32>
      %c0_74 = arith.constant 0 : index
      %c6_75 = arith.constant 6 : index
      %129 = vector.load %arg10[%c0_74, %c6_75] : memref<16x16xf32, #tpu.memory_space<vmem>>, vector<16x1xf32>
      tpu.vector_store %arg10[%c0_74, %c6_75], %128 {strides = array<i32>} : memref<16x16xf32, #tpu.memory_space<vmem>>, vector<16x1xf32>,
      %130 = vector.extract_strided_slice %7 {offsets = [7, 0], sizes = [1, 64], strides = [1, 1]} : vector<16x64xf32> to vector<1x64xf32>
      %131 = vector.broadcast %130 : vector<1x64xf32> to vector<16x64xf32>
      %132 = arith.addf %87, %131 : vector<16x64xf32>
      %cst_76 = arith.constant dense<0xFF800000> : vector<16xf32>
      %133 = vector.multi_reduction <maximumf>, %132, %cst_76 [1] : vector<16x64xf32> to vector<16xf32>
      %134 = vector.shape_cast %133 : vector<16xf32> to vector<16x1xf32>
      %c0_77 = arith.constant 0 : index
      %c7_78 = arith.constant 7 : index
      %135 = vector.load %arg10[%c0_77, %c7_78] : memref<16x16xf32, #tpu.memory_space<vmem>>, vector<16x1xf32>
      tpu.vector_store %arg10[%c0_77, %c7_78], %134 {strides = array<i32>} : memref<16x16xf32, #tpu.memory_space<vmem>>, vector<16x1xf32>,
      %136 = vector.extract_strided_slice %7 {offsets = [8, 0], sizes = [1, 64], strides = [1, 1]} : vector<16x64xf32> to vector<1x64xf32>
      %137 = vector.broadcast %136 : vector<1x64xf32> to vector<16x64xf32>
      %138 = arith.addf %87, %137 : vector<16x64xf32>
      %cst_79 = arith.constant dense<0xFF800000> : vector<16xf32>
      %139 = vector.multi_reduction <maximumf>, %138, %cst_79 [1] : vector<16x64xf32> to vector<16xf32>
      %140 = vector.shape_cast %139 : vector<16xf32> to vector<16x1xf32>
      %c0_80 = arith.constant 0 : index
      %c8_81 = arith.constant 8 : index
      %141 = vector.load %arg10[%c0_80, %c8_81] : memref<16x16xf32, #tpu.memory_space<vmem>>, vector<16x1xf32>
      tpu.vector_store %arg10[%c0_80, %c8_81], %140 {strides = array<i32>} : memref<16x16xf32, #tpu.memory_space<vmem>>, vector<16x1xf32>,
      %142 = vector.extract_strided_slice %7 {offsets = [9, 0], sizes = [1, 64], strides = [1, 1]} : vector<16x64xf32> to vector<1x64xf32>
      %143 = vector.broadcast %142 : vector<1x64xf32> to vector<16x64xf32>
      %144 = arith.addf %87, %143 : vector<16x64xf32>
      %cst_82 = arith.constant dense<0xFF800000> : vector<16xf32>
      %145 = vector.multi_reduction <maximumf>, %144, %cst_82 [1] : vector<16x64xf32> to vector<16xf32>
      %146 = vector.shape_cast %145 : vector<16xf32> to vector<16x1xf32>
      %c0_83 = arith.constant 0 : index
      %c9_84 = arith.constant 9 : index
      %147 = vector.load %arg10[%c0_83, %c9_84] : memref<16x16xf32, #tpu.memory_space<vmem>>, vector<16x1xf32>
      tpu.vector_store %arg10[%c0_83, %c9_84], %146 {strides = array<i32>} : memref<16x16xf32, #tpu.memory_space<vmem>>, vector<16x1xf32>,
      %148 = vector.extract_strided_slice %7 {offsets = [10, 0], sizes = [1, 64], strides = [1, 1]} : vector<16x64xf32> to vector<1x64xf32>
      %149 = vector.broadcast %148 : vector<1x64xf32> to vector<16x64xf32>
      %150 = arith.addf %87, %149 : vector<16x64xf32>
      %cst_85 = arith.constant dense<0xFF800000> : vector<16xf32>
      %151 = vector.multi_reduction <maximumf>, %150, %cst_85 [1] : vector<16x64xf32> to vector<16xf32>
      %152 = vector.shape_cast %151 : vector<16xf32> to vector<16x1xf32>
      %c0_86 = arith.constant 0 : index
      %c10_87 = arith.constant 10 : index
      %153 = vector.load %arg10[%c0_86, %c10_87] : memref<16x16xf32, #tpu.memory_space<vmem>>, vector<16x1xf32>
      tpu.vector_store %arg10[%c0_86, %c10_87], %152 {strides = array<i32>} : memref<16x16xf32, #tpu.memory_space<vmem>>, vector<16x1xf32>,
      %154 = vector.extract_strided_slice %7 {offsets = [11, 0], sizes = [1, 64], strides = [1, 1]} : vector<16x64xf32> to vector<1x64xf32>
      %155 = vector.broadcast %154 : vector<1x64xf32> to vector<16x64xf32>
      %156 = arith.addf %87, %155 : vector<16x64xf32>
      %cst_88 = arith.constant dense<0xFF800000> : vector<16xf32>
      %157 = vector.multi_reduction <maximumf>, %156, %cst_88 [1] : vector<16x64xf32> to vector<16xf32>
      %158 = vector.shape_cast %157 : vector<16xf32> to vector<16x1xf32>
      %c0_89 = arith.constant 0 : index
      %c11_90 = arith.constant 11 : index
      %159 = vector.load %arg10[%c0_89, %c11_90] : memref<16x16xf32, #tpu.memory_space<vmem>>, vector<16x1xf32>
      tpu.vector_store %arg10[%c0_89, %c11_90], %158 {strides = array<i32>} : memref<16x16xf32, #tpu.memory_space<vmem>>, vector<16x1xf32>,
      %160 = vector.extract_strided_slice %7 {offsets = [12, 0], sizes = [1, 64], strides = [1, 1]} : vector<16x64xf32> to vector<1x64xf32>
      %161 = vector.broadcast %160 : vector<1x64xf32> to vector<16x64xf32>
      %162 = arith.addf %87, %161 : vector<16x64xf32>
      %cst_91 = arith.constant dense<0xFF800000> : vector<16xf32>
      %163 = vector.multi_reduction <maximumf>, %162, %cst_91 [1] : vector<16x64xf32> to vector<16xf32>
      %164 = vector.shape_cast %163 : vector<16xf32> to vector<16x1xf32>
      %c0_92 = arith.constant 0 : index
      %c12_93 = arith.constant 12 : index
      %165 = vector.load %arg10[%c0_92, %c12_93] : memref<16x16xf32, #tpu.memory_space<vmem>>, vector<16x1xf32>
      tpu.vector_store %arg10[%c0_92, %c12_93], %164 {strides = array<i32>} : memref<16x16xf32, #tpu.memory_space<vmem>>, vector<16x1xf32>,
      %166 = vector.extract_strided_slice %7 {offsets = [13, 0], sizes = [1, 64], strides = [1, 1]} : vector<16x64xf32> to vector<1x64xf32>
      %167 = vector.broadcast %166 : vector<1x64xf32> to vector<16x64xf32>
      %168 = arith.addf %87, %167 : vector<16x64xf32>
      %cst_94 = arith.constant dense<0xFF800000> : vector<16xf32>
      %169 = vector.multi_reduction <maximumf>, %168, %cst_94 [1] : vector<16x64xf32> to vector<16xf32>
      %170 = vector.shape_cast %169 : vector<16xf32> to vector<16x1xf32>
      %c0_95 = arith.constant 0 : index
      %c13_96 = arith.constant 13 : index
      %171 = vector.load %arg10[%c0_95, %c13_96] : memref<16x16xf32, #tpu.memory_space<vmem>>, vector<16x1xf32>
      tpu.vector_store %arg10[%c0_95, %c13_96], %170 {strides = array<i32>} : memref<16x16xf32, #tpu.memory_space<vmem>>, vector<16x1xf32>,
      %172 = vector.extract_strided_slice %7 {offsets = [14, 0], sizes = [1, 64], strides = [1, 1]} : vector<16x64xf32> to vector<1x64xf32>
      %173 = vector.broadcast %172 : vector<1x64xf32> to vector<16x64xf32>
      %174 = arith.addf %87, %173 : vector<16x64xf32>
      %cst_97 = arith.constant dense<0xFF800000> : vector<16xf32>
      %175 = vector.multi_reduction <maximumf>, %174, %cst_97 [1] : vector<16x64xf32> to vector<16xf32>
      %176 = vector.shape_cast %175 : vector<16xf32> to vector<16x1xf32>
      %c0_98 = arith.constant 0 : index
      %c14_99 = arith.constant 14 : index
      %177 = vector.load %arg10[%c0_98, %c14_99] : memref<16x16xf32, #tpu.memory_space<vmem>>, vector<16x1xf32>
      tpu.vector_store %arg10[%c0_98, %c14_99], %176 {strides = array<i32>} : memref<16x16xf32, #tpu.memory_space<vmem>>, vector<16x1xf32>,
      %178 = vector.extract_strided_slice %7 {offsets = [15, 0], sizes = [1, 64], strides = [1, 1]} : vector<16x64xf32> to vector<1x64xf32>
      %179 = vector.broadcast %178 : vector<1x64xf32> to vector<16x64xf32>
      %180 = arith.addf %87, %179 : vector<16x64xf32>
      %cst_100 = arith.constant dense<0xFF800000> : vector<16xf32>
      %181 = vector.multi_reduction <maximumf>, %180, %cst_100 [1] : vector<16x64xf32> to vector<16xf32>
      %182 = vector.shape_cast %181 : vector<16xf32> to vector<16x1xf32>
      %c0_101 = arith.constant 0 : index
      %c15_102 = arith.constant 15 : index
      %183 = vector.load %arg10[%c0_101, %c15_102] : memref<16x16xf32, #tpu.memory_space<vmem>>, vector<16x1xf32>
      tpu.vector_store %arg10[%c0_101, %c15_102], %182 {strides = array<i32>} : memref<16x16xf32, #tpu.memory_space<vmem>>, vector<16x1xf32>,
      %c0_103 = arith.constant 0 : index
      %c0_104 = arith.constant 0 : index
      %184 = vector.load %arg10[%c0_103, %c0_104] : memref<16x16xf32, #tpu.memory_space<vmem>>, vector<16x16xf32>
      %185 = vector.broadcast %2 : vector<16x1xf32> to vector<16x16xf32>
      %186 = arith.mulf %185, %184 : vector<16x16xf32>
      %cst_105 = arith.constant dense<0.000000e+00> : vector<16xf32>
      %187 = vector.multi_reduction <add>, %186, %cst_105 [0] : vector<16x16xf32> to vector<16xf32>
      %188 = vector.shape_cast %187 : vector<16xf32> to vector<1x16xf32>
      %189 = vector.broadcast %0 : f32 to vector<1x16xf32>
      %190 = arith.addf %188, %189 : vector<1x16xf32>
      %cst_106 = arith.constant 0.000000e+00 : f32
      %191 = vector.broadcast %cst_106 : f32 to vector<1x16xf32>
      %192 = arith.maximumf %22, %191 : vector<1x16xf32>
      %cst_107 = arith.constant 0.000000e+00 : f32
      %193 = vector.broadcast %cst_107 : f32 to vector<1x16xf32>
      %194 = arith.maximumf %190, %193 : vector<1x16xf32>
      %195 = vector.broadcast %3 : vector<16x1xf32> to vector<16x16xf32>
      %196 = vector.broadcast %192 : vector<1x16xf32> to vector<16x16xf32>
      %197 = arith.mulf %195, %196 : vector<16x16xf32>
      %198 = vector.broadcast %4 : vector<16x1xf32> to vector<16x16xf32>
      %199 = vector.broadcast %194 : vector<1x16xf32> to vector<16x16xf32>
      %200 = arith.mulf %198, %199 : vector<16x16xf32>
      %201 = arith.addf %197, %200 : vector<16x16xf32>
      %202 = vector.broadcast %5 : vector<16x1xf32> to vector<16x16xf32>
      %203 = arith.addf %201, %202 : vector<16x16xf32>
      %cst_108 = arith.constant dense<0.000000e+00> : vector<16x64xf32>
      %204 = tpu.matmul %203, %8, %cst_108 {dimension_numbers = #tpu.dot_dimension_numbers<[1], [0], [0], [1], [0, 0, 1, 1], [], []>} : vector<16x16xf32>, vector<16x64xf32>, vector<16x64xf32> -> vector<16x64xf32>
      %cst_109 = arith.constant 0.000000e+00 : f32
      %205 = vector.broadcast %cst_109 : f32 to vector<16x64xf32>
      %206 = arith.subf %205, %204 : vector<16x64xf32>
      %207 = math.exp %206 : vector<16x64xf32>
      %cst_110 = arith.constant 1.000000e+00 : f32
      %208 = vector.broadcast %cst_110 : f32 to vector<16x64xf32>
      %209 = arith.addf %208, %207 : vector<16x64xf32>
      %210 = tpu.reciprocal %209 {approx = true} : vector<16x64xf32> -> vector<16x64xf32>
      %cst_111 = arith.constant 1.000000e+00 : f32
      %211 = vector.broadcast %cst_111 : f32 to vector<16x64xf32>
      %212 = arith.addf %211, %210 : vector<16x64xf32>
      %c0_i32_112 = arith.constant 0 : i32
      %213 = arith.addi %11, %c0_i32_112 : i32
      %214 = tpu.assume_multiple %213, 2 : i32
      %215 = arith.index_cast %214 : i32 to index
      %c0_113 = arith.constant 0 : index
      %216 = vector.load %arg1[%215, %c0_113] : memref<64x64xf32, #tpu.memory_space<vmem>>, vector<2x64xf32>
      %217 = vector.extract_strided_slice %212 {offsets = [0, 0], sizes = [1, 64], strides = [1, 1]} : vector<16x64xf32> to vector<1x64xf32>
      %218 = vector.broadcast %217 : vector<1x64xf32> to vector<2x64xf32>
      %219 = arith.mulf %216, %218 : vector<2x64xf32>
      %220 = arith.index_cast %214 : i32 to index
      %c0_114 = arith.constant 0 : index
      %221 = vector.load %arg8[%220, %c0_114] : memref<64x64xf32, #tpu.memory_space<vmem>>, vector<2x64xf32>
      tpu.vector_store %arg8[%220, %c0_114], %219 {strides = array<i32>} : memref<64x64xf32, #tpu.memory_space<vmem>>, vector<2x64xf32>,
      %c2_i32_115 = arith.constant 2 : i32
      %222 = arith.addi %11, %c2_i32_115 : i32
      %223 = tpu.assume_multiple %222, 2 : i32
      %224 = arith.index_cast %223 : i32 to index
      %c0_116 = arith.constant 0 : index
      %225 = vector.load %arg1[%224, %c0_116] : memref<64x64xf32, #tpu.memory_space<vmem>>, vector<2x64xf32>
      %226 = vector.extract_strided_slice %212 {offsets = [1, 0], sizes = [1, 64], strides = [1, 1]} : vector<16x64xf32> to vector<1x64xf32>
      %227 = vector.broadcast %226 : vector<1x64xf32> to vector<2x64xf32>
      %228 = arith.mulf %225, %227 : vector<2x64xf32>
      %229 = arith.index_cast %223 : i32 to index
      %c0_117 = arith.constant 0 : index
      %230 = vector.load %arg8[%229, %c0_117] : memref<64x64xf32, #tpu.memory_space<vmem>>, vector<2x64xf32>
      tpu.vector_store %arg8[%229, %c0_117], %228 {strides = array<i32>} : memref<64x64xf32, #tpu.memory_space<vmem>>, vector<2x64xf32>,
      %c4_i32 = arith.constant 4 : i32
      %231 = arith.addi %11, %c4_i32 : i32
      %232 = tpu.assume_multiple %231, 2 : i32
      %233 = arith.index_cast %232 : i32 to index
      %c0_118 = arith.constant 0 : index
      %234 = vector.load %arg1[%233, %c0_118] : memref<64x64xf32, #tpu.memory_space<vmem>>, vector<2x64xf32>
      %235 = vector.extract_strided_slice %212 {offsets = [2, 0], sizes = [1, 64], strides = [1, 1]} : vector<16x64xf32> to vector<1x64xf32>
      %236 = vector.broadcast %235 : vector<1x64xf32> to vector<2x64xf32>
      %237 = arith.mulf %234, %236 : vector<2x64xf32>
      %238 = arith.index_cast %232 : i32 to index
      %c0_119 = arith.constant 0 : index
      %239 = vector.load %arg8[%238, %c0_119] : memref<64x64xf32, #tpu.memory_space<vmem>>, vector<2x64xf32>
      tpu.vector_store %arg8[%238, %c0_119], %237 {strides = array<i32>} : memref<64x64xf32, #tpu.memory_space<vmem>>, vector<2x64xf32>,
      %c6_i32 = arith.constant 6 : i32
      %240 = arith.addi %11, %c6_i32 : i32
      %241 = tpu.assume_multiple %240, 2 : i32
      %242 = arith.index_cast %241 : i32 to index
      %c0_120 = arith.constant 0 : index
      %243 = vector.load %arg1[%242, %c0_120] : memref<64x64xf32, #tpu.memory_space<vmem>>, vector<2x64xf32>
      %244 = vector.extract_strided_slice %212 {offsets = [3, 0], sizes = [1, 64], strides = [1, 1]} : vector<16x64xf32> to vector<1x64xf32>
      %245 = vector.broadcast %244 : vector<1x64xf32> to vector<2x64xf32>
      %246 = arith.mulf %243, %245 : vector<2x64xf32>
      %247 = arith.index_cast %241 : i32 to index
      %c0_121 = arith.constant 0 : index
      %248 = vector.load %arg8[%247, %c0_121] : memref<64x64xf32, #tpu.memory_space<vmem>>, vector<2x64xf32>
      tpu.vector_store %arg8[%247, %c0_121], %246 {strides = array<i32>} : memref<64x64xf32, #tpu.memory_space<vmem>>, vector<2x64xf32>,
      %c8_i32 = arith.constant 8 : i32
      %249 = arith.addi %11, %c8_i32 : i32
      %250 = tpu.assume_multiple %249, 2 : i32
      %251 = arith.index_cast %250 : i32 to index
      %c0_122 = arith.constant 0 : index
      %252 = vector.load %arg1[%251, %c0_122] : memref<64x64xf32, #tpu.memory_space<vmem>>, vector<2x64xf32>
      %253 = vector.extract_strided_slice %212 {offsets = [4, 0], sizes = [1, 64], strides = [1, 1]} : vector<16x64xf32> to vector<1x64xf32>
      %254 = vector.broadcast %253 : vector<1x64xf32> to vector<2x64xf32>
      %255 = arith.mulf %252, %254 : vector<2x64xf32>
      %256 = arith.index_cast %250 : i32 to index
      %c0_123 = arith.constant 0 : index
      %257 = vector.load %arg8[%256, %c0_123] : memref<64x64xf32, #tpu.memory_space<vmem>>, vector<2x64xf32>
      tpu.vector_store %arg8[%256, %c0_123], %255 {strides = array<i32>} : memref<64x64xf32, #tpu.memory_space<vmem>>, vector<2x64xf32>,
      %c10_i32 = arith.constant 10 : i32
      %258 = arith.addi %11, %c10_i32 : i32
      %259 = tpu.assume_multiple %258, 2 : i32
      %260 = arith.index_cast %259 : i32 to index
      %c0_124 = arith.constant 0 : index
      %261 = vector.load %arg1[%260, %c0_124] : memref<64x64xf32, #tpu.memory_space<vmem>>, vector<2x64xf32>
      %262 = vector.extract_strided_slice %212 {offsets = [5, 0], sizes = [1, 64], strides = [1, 1]} : vector<16x64xf32> to vector<1x64xf32>
      %263 = vector.broadcast %262 : vector<1x64xf32> to vector<2x64xf32>
      %264 = arith.mulf %261, %263 : vector<2x64xf32>
      %265 = arith.index_cast %259 : i32 to index
      %c0_125 = arith.constant 0 : index
      %266 = vector.load %arg8[%265, %c0_125] : memref<64x64xf32, #tpu.memory_space<vmem>>, vector<2x64xf32>
      tpu.vector_store %arg8[%265, %c0_125], %264 {strides = array<i32>} : memref<64x64xf32, #tpu.memory_space<vmem>>, vector<2x64xf32>,
      %c12_i32 = arith.constant 12 : i32
      %267 = arith.addi %11, %c12_i32 : i32
      %268 = tpu.assume_multiple %267, 2 : i32
      %269 = arith.index_cast %268 : i32 to index
      %c0_126 = arith.constant 0 : index
      %270 = vector.load %arg1[%269, %c0_126] : memref<64x64xf32, #tpu.memory_space<vmem>>, vector<2x64xf32>
      %271 = vector.extract_strided_slice %212 {offsets = [6, 0], sizes = [1, 64], strides = [1, 1]} : vector<16x64xf32> to vector<1x64xf32>
      %272 = vector.broadcast %271 : vector<1x64xf32> to vector<2x64xf32>
      %273 = arith.mulf %270, %272 : vector<2x64xf32>
      %274 = arith.index_cast %268 : i32 to index
      %c0_127 = arith.constant 0 : index
      %275 = vector.load %arg8[%274, %c0_127] : memref<64x64xf32, #tpu.memory_space<vmem>>, vector<2x64xf32>
      tpu.vector_store %arg8[%274, %c0_127], %273 {strides = array<i32>} : memref<64x64xf32, #tpu.memory_space<vmem>>, vector<2x64xf32>,
      %c14_i32 = arith.constant 14 : i32
      %276 = arith.addi %11, %c14_i32 : i32
      %277 = tpu.assume_multiple %276, 2 : i32
      %278 = arith.index_cast %277 : i32 to index
      %c0_128 = arith.constant 0 : index
      %279 = vector.load %arg1[%278, %c0_128] : memref<64x64xf32, #tpu.memory_space<vmem>>, vector<2x64xf32>
      %280 = vector.extract_strided_slice %212 {offsets = [7, 0], sizes = [1, 64], strides = [1, 1]} : vector<16x64xf32> to vector<1x64xf32>
      %281 = vector.broadcast %280 : vector<1x64xf32> to vector<2x64xf32>
      %282 = arith.mulf %279, %281 : vector<2x64xf32>
      %283 = arith.index_cast %277 : i32 to index
      %c0_129 = arith.constant 0 : index
      %284 = vector.load %arg8[%283, %c0_129] : memref<64x64xf32, #tpu.memory_space<vmem>>, vector<2x64xf32>
      tpu.vector_store %arg8[%283, %c0_129], %282 {strides = array<i32>} : memref<64x64xf32, #tpu.memory_space<vmem>>, vector<2x64xf32>,
      %c16_i32 = arith.constant 16 : i32
      %285 = arith.addi %11, %c16_i32 : i32
      %286 = tpu.assume_multiple %285, 2 : i32
      %287 = arith.index_cast %286 : i32 to index
      %c0_130 = arith.constant 0 : index
      %288 = vector.load %arg1[%287, %c0_130] : memref<64x64xf32, #tpu.memory_space<vmem>>, vector<2x64xf32>
      %289 = vector.extract_strided_slice %212 {offsets = [8, 0], sizes = [1, 64], strides = [1, 1]} : vector<16x64xf32> to vector<1x64xf32>
      %290 = vector.broadcast %289 : vector<1x64xf32> to vector<2x64xf32>
      %291 = arith.mulf %288, %290 : vector<2x64xf32>
      %292 = arith.index_cast %286 : i32 to index
      %c0_131 = arith.constant 0 : index
      %293 = vector.load %arg8[%292, %c0_131] : memref<64x64xf32, #tpu.memory_space<vmem>>, vector<2x64xf32>
      tpu.vector_store %arg8[%292, %c0_131], %291 {strides = array<i32>} : memref<64x64xf32, #tpu.memory_space<vmem>>, vector<2x64xf32>,
      %c18_i32 = arith.constant 18 : i32
      %294 = arith.addi %11, %c18_i32 : i32
      %295 = tpu.assume_multiple %294, 2 : i32
      %296 = arith.index_cast %295 : i32 to index
      %c0_132 = arith.constant 0 : index
      %297 = vector.load %arg1[%296, %c0_132] : memref<64x64xf32, #tpu.memory_space<vmem>>, vector<2x64xf32>
      %298 = vector.extract_strided_slice %212 {offsets = [9, 0], sizes = [1, 64], strides = [1, 1]} : vector<16x64xf32> to vector<1x64xf32>
      %299 = vector.broadcast %298 : vector<1x64xf32> to vector<2x64xf32>
      %300 = arith.mulf %297, %299 : vector<2x64xf32>
      %301 = arith.index_cast %295 : i32 to index
      %c0_133 = arith.constant 0 : index
      %302 = vector.load %arg8[%301, %c0_133] : memref<64x64xf32, #tpu.memory_space<vmem>>, vector<2x64xf32>
      tpu.vector_store %arg8[%301, %c0_133], %300 {strides = array<i32>} : memref<64x64xf32, #tpu.memory_space<vmem>>, vector<2x64xf32>,
      %c20_i32 = arith.constant 20 : i32
      %303 = arith.addi %11, %c20_i32 : i32
      %304 = tpu.assume_multiple %303, 2 : i32
      %305 = arith.index_cast %304 : i32 to index
      %c0_134 = arith.constant 0 : index
      %306 = vector.load %arg1[%305, %c0_134] : memref<64x64xf32, #tpu.memory_space<vmem>>, vector<2x64xf32>
      %307 = vector.extract_strided_slice %212 {offsets = [10, 0], sizes = [1, 64], strides = [1, 1]} : vector<16x64xf32> to vector<1x64xf32>
      %308 = vector.broadcast %307 : vector<1x64xf32> to vector<2x64xf32>
      %309 = arith.mulf %306, %308 : vector<2x64xf32>
      %310 = arith.index_cast %304 : i32 to index
      %c0_135 = arith.constant 0 : index
      %311 = vector.load %arg8[%310, %c0_135] : memref<64x64xf32, #tpu.memory_space<vmem>>, vector<2x64xf32>
      tpu.vector_store %arg8[%310, %c0_135], %309 {strides = array<i32>} : memref<64x64xf32, #tpu.memory_space<vmem>>, vector<2x64xf32>,
      %c22_i32 = arith.constant 22 : i32
      %312 = arith.addi %11, %c22_i32 : i32
      %313 = tpu.assume_multiple %312, 2 : i32
      %314 = arith.index_cast %313 : i32 to index
      %c0_136 = arith.constant 0 : index
      %315 = vector.load %arg1[%314, %c0_136] : memref<64x64xf32, #tpu.memory_space<vmem>>, vector<2x64xf32>
      %316 = vector.extract_strided_slice %212 {offsets = [11, 0], sizes = [1, 64], strides = [1, 1]} : vector<16x64xf32> to vector<1x64xf32>
      %317 = vector.broadcast %316 : vector<1x64xf32> to vector<2x64xf32>
      %318 = arith.mulf %315, %317 : vector<2x64xf32>
      %319 = arith.index_cast %313 : i32 to index
      %c0_137 = arith.constant 0 : index
      %320 = vector.load %arg8[%319, %c0_137] : memref<64x64xf32, #tpu.memory_space<vmem>>, vector<2x64xf32>
      tpu.vector_store %arg8[%319, %c0_137], %318 {strides = array<i32>} : memref<64x64xf32, #tpu.memory_space<vmem>>, vector<2x64xf32>,
      %c24_i32 = arith.constant 24 : i32
      %321 = arith.addi %11, %c24_i32 : i32
      %322 = tpu.assume_multiple %321, 2 : i32
      %323 = arith.index_cast %322 : i32 to index
      %c0_138 = arith.constant 0 : index
      %324 = vector.load %arg1[%323, %c0_138] : memref<64x64xf32, #tpu.memory_space<vmem>>, vector<2x64xf32>
      %325 = vector.extract_strided_slice %212 {offsets = [12, 0], sizes = [1, 64], strides = [1, 1]} : vector<16x64xf32> to vector<1x64xf32>
      %326 = vector.broadcast %325 : vector<1x64xf32> to vector<2x64xf32>
      %327 = arith.mulf %324, %326 : vector<2x64xf32>
      %328 = arith.index_cast %322 : i32 to index
      %c0_139 = arith.constant 0 : index
      %329 = vector.load %arg8[%328, %c0_139] : memref<64x64xf32, #tpu.memory_space<vmem>>, vector<2x64xf32>
      tpu.vector_store %arg8[%328, %c0_139], %327 {strides = array<i32>} : memref<64x64xf32, #tpu.memory_space<vmem>>, vector<2x64xf32>,
      %c26_i32 = arith.constant 26 : i32
      %330 = arith.addi %11, %c26_i32 : i32
      %331 = tpu.assume_multiple %330, 2 : i32
      %332 = arith.index_cast %331 : i32 to index
      %c0_140 = arith.constant 0 : index
      %333 = vector.load %arg1[%332, %c0_140] : memref<64x64xf32, #tpu.memory_space<vmem>>, vector<2x64xf32>
      %334 = vector.extract_strided_slice %212 {offsets = [13, 0], sizes = [1, 64], strides = [1, 1]} : vector<16x64xf32> to vector<1x64xf32>
      %335 = vector.broadcast %334 : vector<1x64xf32> to vector<2x64xf32>
      %336 = arith.mulf %333, %335 : vector<2x64xf32>
      %337 = arith.index_cast %331 : i32 to index
      %c0_141 = arith.constant 0 : index
      %338 = vector.load %arg8[%337, %c0_141] : memref<64x64xf32, #tpu.memory_space<vmem>>, vector<2x64xf32>
      tpu.vector_store %arg8[%337, %c0_141], %336 {strides = array<i32>} : memref<64x64xf32, #tpu.memory_space<vmem>>, vector<2x64xf32>,
      %c28_i32 = arith.constant 28 : i32
      %339 = arith.addi %11, %c28_i32 : i32
      %340 = tpu.assume_multiple %339, 2 : i32
      %341 = arith.index_cast %340 : i32 to index
      %c0_142 = arith.constant 0 : index
      %342 = vector.load %arg1[%341, %c0_142] : memref<64x64xf32, #tpu.memory_space<vmem>>, vector<2x64xf32>
      %343 = vector.extract_strided_slice %212 {offsets = [14, 0], sizes = [1, 64], strides = [1, 1]} : vector<16x64xf32> to vector<1x64xf32>
      %344 = vector.broadcast %343 : vector<1x64xf32> to vector<2x64xf32>
      %345 = arith.mulf %342, %344 : vector<2x64xf32>
      %346 = arith.index_cast %340 : i32 to index
      %c0_143 = arith.constant 0 : index
      %347 = vector.load %arg8[%346, %c0_143] : memref<64x64xf32, #tpu.memory_space<vmem>>, vector<2x64xf32>
      tpu.vector_store %arg8[%346, %c0_143], %345 {strides = array<i32>} : memref<64x64xf32, #tpu.memory_space<vmem>>, vector<2x64xf32>,
      %c30_i32 = arith.constant 30 : i32
      %348 = arith.addi %11, %c30_i32 : i32
      %349 = tpu.assume_multiple %348, 2 : i32
      %350 = arith.index_cast %349 : i32 to index
      %c0_144 = arith.constant 0 : index
      %351 = vector.load %arg1[%350, %c0_144] : memref<64x64xf32, #tpu.memory_space<vmem>>, vector<2x64xf32>
      %352 = vector.extract_strided_slice %212 {offsets = [15, 0], sizes = [1, 64], strides = [1, 1]} : vector<16x64xf32> to vector<1x64xf32>
      %353 = vector.broadcast %352 : vector<1x64xf32> to vector<2x64xf32>
      %354 = arith.mulf %351, %353 : vector<2x64xf32>
      %355 = arith.index_cast %349 : i32 to index
      %c0_145 = arith.constant 0 : index
      %356 = vector.load %arg8[%355, %c0_145] : memref<64x64xf32, #tpu.memory_space<vmem>>, vector<2x64xf32>
      tpu.vector_store %arg8[%355, %c0_145], %354 {strides = array<i32>} : memref<64x64xf32, #tpu.memory_space<vmem>>, vector<2x64xf32>,
    }
    %c2_i32_13 = arith.constant 2 : i32
    return
  }
  func.func @transform_0(%arg0: i32) -> (i32, i32) {
    %c0_i32 = arith.constant 0 : i32
    %c0_i32_0 = arith.constant 0 : i32
    return %arg0, %c0_i32 : i32, i32
  }
  func.func @transform_1(%arg0: i32) -> (i32, i32) {
    %c0_i32 = arith.constant 0 : i32
    %c0_i32_0 = arith.constant 0 : i32
    %c0_i32_1 = arith.constant 0 : i32
    return %c0_i32, %c0_i32_0 : i32, i32
  }
  func.func @transform_2(%arg0: i32) -> (i32, i32) {
    %c0_i32 = arith.constant 0 : i32
    %c0_i32_0 = arith.constant 0 : i32
    %c0_i32_1 = arith.constant 0 : i32
    return %c0_i32, %c0_i32_0 : i32, i32
  }
  func.func @transform_3(%arg0: i32) -> (i32, i32) {
    %c0_i32 = arith.constant 0 : i32
    %c0_i32_0 = arith.constant 0 : i32
    %c0_i32_1 = arith.constant 0 : i32
    return %c0_i32, %c0_i32_0 : i32, i32
  }
  func.func @transform_4(%arg0: i32) -> (i32, i32) {
    %c0_i32 = arith.constant 0 : i32
    %c0_i32_0 = arith.constant 0 : i32
    %c0_i32_1 = arith.constant 0 : i32
    return %c0_i32, %c0_i32_0 : i32, i32
  }
  func.func @transform_5(%arg0: i32) -> (i32, i32) {
    %c0_i32 = arith.constant 0 : i32
    %c0_i32_0 = arith.constant 0 : i32
    %c0_i32_1 = arith.constant 0 : i32
    return %c0_i32, %c0_i32_0 : i32, i32
  }
  func.func @transform_6(%arg0: i32) -> i32 {
    %c0_i32 = arith.constant 0 : i32
    %c0_i32_0 = arith.constant 0 : i32
    return %c0_i32 : i32
  }
  func.func @transform_7(%arg0: i32) -> (i32, i32) {
    %c0_i32 = arith.constant 0 : i32
    %c0_i32_0 = arith.constant 0 : i32
    return %arg0, %c0_i32 : i32, i32
  }
}

</mosaic_0001>

<llo_original>
// kernel: tpu_custom_call.1
$region0: #{tpu_custom_call.1}
  #allocation0 [shape = 'u32[]', space=smem, size = 0x4, offset = 0x4, fixed_abs, tag = 'smem constant byte address 0x4 - core index']
  #allocation1 [shape = 'u32[144,128]{1,0:T(1,128)}', space=vmem, size = 0x12000, scoped, tag = 'internal scratch']
  #allocation2 [shape = 'f32[16,64]{1,0:T(8,128)}', space=vmem, size = 0x2000, scoped, tag = 'scratch operand']
  #allocation3 [shape = 'f32[16,16]{1,0:T(8,128)}', space=vmem, size = 0x2000, scoped, tag = 'scratch operand']
  #allocation4 [shape = 'f32[1]{0:T(128)S(6)}', space=smem, size = 0x200, scoped, tag = 'scoped memory for tpu_custom_call.1']
  %s0 = inlined_call_operand.vmem [shape: f32[128,64], index: 0, kind: input, shape index: {}]
  %s1 = inlined_call_operand.vmem [shape: f32[64,16], index: 1, kind: input, shape index: {}]
  %s2 = inlined_call_operand.vmem [shape: f32[16,64], index: 2, kind: input, shape index: {}]
  %s3 = inlined_call_operand.vmem [shape: f32[32,1], index: 3, kind: input, shape index: {}]
  %s4 = inlined_call_operand.vmem [shape: f32[16,4], index: 4, kind: input, shape index: {}]
  %s5 = inlined_call_operand.vmem [shape: f32[16,64], index: 5, kind: input, shape index: {}]
  %s6 = inlined_call_operand.<no memory space> [shape: f32[1], index: 6, kind: input, shape index: {}]
  %s7 = inlined_call_operand.vmem [shape: f32[128,64], index: 7, kind: output, shape index: {}]
  %s8 = sld [smem:[#allocation0]]
  $region68: #{tpu_custom_call.1} parent=0
    _
  %s10 = ssub.s32 1, %s8
  %s11 = scalar_select 0, %s10, %s8
  %12 = sst [smem:[#allocation4]] %s6
  loop: start=0, step=1, limit=4
  $region2: #{tpu_custom_call.1} parent=0 // loop_pre_header
    _
  $region3: #{tpu_custom_call.1} parent=0 // loop_header
    %s14 = sphi 0, %s18
    %p15 = scmp.ge.s32.totalorder %s14, 4
    %s24 = sphi 0, %s26
    %s27 = sphi 0, %s24
    %s28 = sphi 0, %s27
    %s44 = sphi 0, %s28
    %s48 = sphi 0, %s48
    %s50 = sphi 0, %s48
    %s51 = sphi 0, %s50
    %s65 = sphi 0, %s51
    %s69 = sphi 0, %s69
    %s71 = sphi 0, %s69
    %s72 = sphi 0, %s71
    %s86 = sphi 0, %s72
    %s90 = sphi 0, %s90
    %s92 = sphi 0, %s90
    %s93 = sphi 0, %s92
    %s107 = sphi 0, %s93
    %s111 = sphi 0, %s111
    %s113 = sphi 0, %s111
    %s114 = sphi 0, %s113
    %s128 = sphi 0, %s114
    %s132 = sphi 0, %s132
    %s134 = sphi 0, %s132
    %s135 = sphi 0, %s134
    %s149 = sphi 0, %s135
    %s153 = sphi 0, %s153
    %s155 = sphi 0, %s153
    %s156 = sphi 0, %s155
    %s170 = sphi 0, %s156
    %s176 = sphi 0, %s178
    %s179 = sphi 0, %s176
    %s180 = sphi 0, %s179
    %s196 = sphi 0, %s180
  $region4: #{tpu_custom_call.1} parent=0 // loop_header_branch
    %17 = sbr.rel (%p15) target = $region8
  $region5: #{tpu_custom_call.1} parent=0 // loop_body
    %s19 = ssub.s32 %s14, 1
    %s20 = ssub.s32 %s14, 2
    %s21 = sadd.s32 %s14, 1
    %s22 = ssub.s32 %s14, %s21
    %p23 = scmp.eq.s32.totalorder %s22, 0
    %s25 = sadd.s32 %s24, 1
    %s26 = scalar_select %p23, %s24, %s25
    %p29 = pneg %p23
    %p30 = scmp.eq.s32.totalorder %s14, 1
    %p31 = por %p29, %p30
    %p32 = scmp.ne.s32.totalorder %s24, %s27
    %p33 = scmp.eq.s32.totalorder %s14, 0
    %p34 = por %p32, %p33
    %p35 = scmp.ne.s32.totalorder %s24, %s27
    %p36 = scmp.eq.s32.totalorder %s19, 1
    %p37 = por %p35, %p36
    %p38 = scmp.ne.s32.totalorder %s27, %s28
    %p39 = scmp.eq.s32.totalorder %s19, 0
    %p40 = por %p38, %p39
    %p41 = scmp.ne.s32.totalorder %s27, %s28
    %p42 = scmp.eq.s32.totalorder %s20, 1
    %p43 = por %p41, %p42
    %p45 = scmp.ne.s32.totalorder %s28, %s44
    %p46 = scmp.eq.s32.totalorder %s20, 0
    %p47 = por %p45, %p46
    %s49 = sadd.s32 %s48, 1
    %p52 = scmp.eq.s32.totalorder %s14, 1
    %p53 = scmp.ne.s32.totalorder %s48, %s50
    %p54 = scmp.eq.s32.totalorder %s14, 0
    %p55 = por %p53, %p54
    %p56 = scmp.ne.s32.totalorder %s48, %s50
    %p57 = scmp.eq.s32.totalorder %s19, 1
    %p58 = por %p56, %p57
    %p59 = scmp.ne.s32.totalorder %s50, %s51
    %p60 = scmp.eq.s32.totalorder %s19, 0
    %p61 = por %p59, %p60
    %p62 = scmp.ne.s32.totalorder %s50, %s51
    %p63 = scmp.eq.s32.totalorder %s20, 1
    %p64 = por %p62, %p63
    %p66 = scmp.ne.s32.totalorder %s51, %s65
    %p67 = scmp.eq.s32.totalorder %s20, 0
    %p68 = por %p66, %p67
    %s70 = sadd.s32 %s69, 1
    %p73 = scmp.eq.s32.totalorder %s14, 1
    %p74 = scmp.ne.s32.totalorder %s69, %s71
    %p75 = scmp.eq.s32.totalorder %s14, 0
    %p76 = por %p74, %p75
    %p77 = scmp.ne.s32.totalorder %s69, %s71
    %p78 = scmp.eq.s32.totalorder %s19, 1
    %p79 = por %p77, %p78
    %p80 = scmp.ne.s32.totalorder %s71, %s72
    %p81 = scmp.eq.s32.totalorder %s19, 0
    %p82 = por %p80, %p81
    %p83 = scmp.ne.s32.totalorder %s71, %s72
    %p84 = scmp.eq.s32.totalorder %s20, 1
    %p85 = por %p83, %p84
    %p87 = scmp.ne.s32.totalorder %s72, %s86
    %p88 = scmp.eq.s32.totalorder %s20, 0
    %p89 = por %p87, %p88
    %s91 = sadd.s32 %s90, 1
    %p94 = scmp.eq.s32.totalorder %s14, 1
    %p95 = scmp.ne.s32.totalorder %s90, %s92
    %p96 = scmp.eq.s32.totalorder %s14, 0
    %p97 = por %p95, %p96
    %p98 = scmp.ne.s32.totalorder %s90, %s92
    %p99 = scmp.eq.s32.totalorder %s19, 1
    %p100 = por %p98, %p99
    %p101 = scmp.ne.s32.totalorder %s92, %s93
    %p102 = scmp.eq.s32.totalorder %s19, 0
    %p103 = por %p101, %p102
    %p104 = scmp.ne.s32.totalorder %s92, %s93
    %p105 = scmp.eq.s32.totalorder %s20, 1
    %p106 = por %p104, %p105
    %p108 = scmp.ne.s32.totalorder %s93, %s107
    %p109 = scmp.eq.s32.totalorder %s20, 0
    %p110 = por %p108, %p109
    %s112 = sadd.s32 %s111, 1
    %p115 = scmp.eq.s32.totalorder %s14, 1
    %p116 = scmp.ne.s32.totalorder %s111, %s113
    %p117 = scmp.eq.s32.totalorder %s14, 0
    %p118 = por %p116, %p117
    %p119 = scmp.ne.s32.totalorder %s111, %s113
    %p120 = scmp.eq.s32.totalorder %s19, 1
    %p121 = por %p119, %p120
    %p122 = scmp.ne.s32.totalorder %s113, %s114
    %p123 = scmp.eq.s32.totalorder %s19, 0
    %p124 = por %p122, %p123
    %p125 = scmp.ne.s32.totalorder %s113, %s114
    %p126 = scmp.eq.s32.totalorder %s20, 1
    %p127 = por %p125, %p126
    %p129 = scmp.ne.s32.totalorder %s114, %s128
    %p130 = scmp.eq.s32.totalorder %s20, 0
    %p131 = por %p129, %p130
    %s133 = sadd.s32 %s132, 1
    %p136 = scmp.eq.s32.totalorder %s14, 1
    %p137 = scmp.ne.s32.totalorder %s132, %s134
    %p138 = scmp.eq.s32.totalorder %s14, 0
    %p139 = por %p137, %p138
    %p140 = scmp.ne.s32.totalorder %s132, %s134
    %p141 = scmp.eq.s32.totalorder %s19, 1
    %p142 = por %p140, %p141
    %p143 = scmp.ne.s32.totalorder %s134, %s135
    %p144 = scmp.eq.s32.totalorder %s19, 0
    %p145 = por %p143, %p144
    %p146 = scmp.ne.s32.totalorder %s134, %s135
    %p147 = scmp.eq.s32.totalorder %s20, 1
    %p148 = por %p146, %p147
    %p150 = scmp.ne.s32.totalorder %s135, %s149
    %p151 = scmp.eq.s32.totalorder %s20, 0
    %p152 = por %p150, %p151
    %s154 = sadd.s32 %s153, 1
    %p157 = scmp.eq.s32.totalorder %s14, 1
    %p158 = scmp.ne.s32.totalorder %s153, %s155
    %p159 = scmp.eq.s32.totalorder %s14, 0
    %p160 = por %p158, %p159
    %p161 = scmp.ne.s32.totalorder %s153, %s155
    %p162 = scmp.eq.s32.totalorder %s19, 1
    %p163 = por %p161, %p162
    %p164 = scmp.ne.s32.totalorder %s155, %s156
    %p165 = scmp.eq.s32.totalorder %s19, 0
    %p166 = por %p164, %p165
    %p167 = scmp.ne.s32.totalorder %s155, %s156
    %p168 = scmp.eq.s32.totalorder %s20, 1
    %p169 = por %p167, %p168
    %p171 = scmp.ne.s32.totalorder %s156, %s170
    %p172 = scmp.eq.s32.totalorder %s20, 0
    %p173 = por %p171, %p172
    %s174 = ssub.s32 %s14, %s21
    %p175 = scmp.eq.s32.totalorder %s174, 0
    %s177 = sadd.s32 %s176, 1
    %s178 = scalar_select %p175, %s176, %s177
    %p181 = pneg %p175
    %p182 = scmp.eq.s32.totalorder %s14, 1
    %p183 = por %p181, %p182
    %p184 = scmp.ne.s32.totalorder %s176, %s179
    %p185 = scmp.eq.s32.totalorder %s14, 0
    %p186 = por %p184, %p185
    %p187 = scmp.ne.s32.totalorder %s176, %s179
    %p188 = scmp.eq.s32.totalorder %s19, 1
    %p189 = por %p187, %p188
    %p190 = scmp.ne.s32.totalorder %s179, %s180
    %p191 = scmp.eq.s32.totalorder %s19, 0
    %p192 = por %p190, %p191
    %p193 = scmp.ne.s32.totalorder %s179, %s180
    %p194 = scmp.eq.s32.totalorder %s20, 1
    %p195 = por %p193, %p194
    %p197 = scmp.ne.s32.totalorder %s180, %s196
    %p198 = scmp.eq.s32.totalorder %s20, 0
    %p199 = por %p197, %p198
    %p200 = scmp.le.s32.totalorder 1, %s14
    %p201 = scmp.lt.s32.totalorder %s14, 3
    %p202 = pnand %p200, %p201
    %p203 = pneg %p202
    // Predicated region
    $region9: #{tpu_custom_call.1} parent=5 // pred_check
      _
    $region10: #{tpu_custom_call.1} parent=5 // pred_check_branch
      %205 = sbr.rel (%p202) target = $region12
    $region11: #{tpu_custom_call.1} parent=5 // pred_region
      %s206 = ssub.s32 %s14, 1
      // Predicated region
      $region13: #{tpu_custom_call.1} parent=11 // pred_check
        %p207 = pneg %p61
      $region14: #{tpu_custom_call.1} parent=11 // pred_check_branch
        %209 = sbr.rel (%p207) target = $region16
      $region15: #{tpu_custom_call.1} parent=11 // pred_region
        _
      $region16: #{tpu_custom_call.1} parent=11 // pred_fallthru
        _
      // Predicated region
      $region17: #{tpu_custom_call.1} parent=11 // pred_check
        %p210 = pneg %p82
      $region18: #{tpu_custom_call.1} parent=11 // pred_check_branch
        %212 = sbr.rel (%p210) target = $region20
      $region19: #{tpu_custom_call.1} parent=11 // pred_region
        _
      $region20: #{tpu_custom_call.1} parent=11 // pred_fallthru
        _
      // Predicated region
      $region21: #{tpu_custom_call.1} parent=11 // pred_check
        %p213 = pneg %p103
      $region22: #{tpu_custom_call.1} parent=11 // pred_check_branch
        %215 = sbr.rel (%p213) target = $region24
      $region23: #{tpu_custom_call.1} parent=11 // pred_region
        _
      $region24: #{tpu_custom_call.1} parent=11 // pred_fallthru
        _
      // Predicated region
      $region25: #{tpu_custom_call.1} parent=11 // pred_check
        %p216 = pneg %p124
      $region26: #{tpu_custom_call.1} parent=11 // pred_check_branch
        %218 = sbr.rel (%p216) target = $region28
      $region27: #{tpu_custom_call.1} parent=11 // pred_region
        _
      $region28: #{tpu_custom_call.1} parent=11 // pred_fallthru
        _
      // Predicated region
      $region29: #{tpu_custom_call.1} parent=11 // pred_check
        %p219 = pneg %p145
      $region30: #{tpu_custom_call.1} parent=11 // pred_check_branch
        %221 = sbr.rel (%p219) target = $region32
      $region31: #{tpu_custom_call.1} parent=11 // pred_region
        _
      $region32: #{tpu_custom_call.1} parent=11 // pred_fallthru
        _
      // Predicated region
      $region33: #{tpu_custom_call.1} parent=11 // pred_check
        %p222 = pneg %p166
      $region34: #{tpu_custom_call.1} parent=11 // pred_check_branch
        %224 = sbr.rel (%p222) target = $region36
      $region35: #{tpu_custom_call.1} parent=11 // pred_region
        _
      $region36: #{tpu_custom_call.1} parent=11 // pred_fallthru
        _
    $region12: #{tpu_custom_call.1} parent=5 // pred_fallthru
      _
    %p225 = scmp.lt.s32.totalorder %s14, 2
    // Predicated region
    $region37: #{tpu_custom_call.1} parent=5 // pred_check
      %p226 = pneg %p225
    $region38: #{tpu_custom_call.1} parent=5 // pred_check_branch
      %228 = sbr.rel (%p226) target = $region40
    $region39: #{tpu_custom_call.1} parent=5 // pred_region
      // Predicated region
      $region41: #{tpu_custom_call.1} parent=39 // pred_check
        %p229 = pneg %p34
      $region42: #{tpu_custom_call.1} parent=39 // pred_check_branch
        %231 = sbr.rel (%p229) target = $region44
      $region43: #{tpu_custom_call.1} parent=39 // pred_region
        %s232 = smul.u32 8, %s14
        %p233 = scmp.lt.s32.totalorder %s232, 15
        %s234 = scalar_select %p233, %s232, 15
        %s235 = smul.addr %s234, 8
        %s236 = scalar_lea.vmem %s0, %s235
        %s237 = smul.u32 8, %s14
      $region44: #{tpu_custom_call.1} parent=39 // pred_fallthru
        _
    $region40: #{tpu_custom_call.1} parent=5 // pred_fallthru
      _
    %p238 = scmp.le.s32.totalorder 1, %s14
    %p239 = scmp.lt.s32.totalorder %s14, 3
    %p240 = pnand %p238, %p239
    %p241 = pneg %p240
    // Predicated region
    $region45: #{tpu_custom_call.1} parent=5 // pred_check
      _
    $region46: #{tpu_custom_call.1} parent=5 // pred_check_branch
      %243 = sbr.rel (%p240) target = $region48
    $region47: #{tpu_custom_call.1} parent=5 // pred_region
      %s244 = ssub.s32 %s14, 1
      %s245 = smul.u32 8, %s19
      %p246 = scmp.lt.s32.totalorder %s245, 15
      %s247 = scalar_select %p246, %s245, 15
      %s248 = smul.addr %s247, 8
      %s249 = scalar_lea.vmem %s0, %s248
      %p250 = pneg %p40
      %p251 = pneg %p37
      %p252 = pneg %p61
      %p253 = pneg %p58
      %p254 = pneg %p82
      %p255 = pneg %p79
      %p256 = pneg %p103
      %p257 = pneg %p100
      %p258 = pneg %p124
      %p259 = pneg %p121
      %p260 = pneg %p145
      %p261 = pneg %p142
      %p262 = pneg %p166
      %p263 = pneg %p163
      %p264 = pneg %p192
      %p265 = pneg %p189
      %s266 = smul.u32 8, %s19
      %p267 = scmp.lt.s32.totalorder %s266, 15
      %s268 = scalar_select %p267, %s266, 15
      %s269 = smul.addr %s268, 8
      %s270 = scalar_lea.vmem %s7, %s269
      %s271 = smul.u32 8, %s19
      %p272 = scmp.lt.s32.totalorder %s271, 15
      %s273 = scalar_select %p272, %s271, 15
      %s274 = smul.addr %s273, 8
      %s275 = scalar_lea.vmem %s0, %s274
      %s276 = smul.u32 8, %s19
      %s277 = smul.u32 8, %s19
      %p278 = scmp.lt.s32.totalorder %s277, 15
      %s279 = scalar_select %p278, %s277, 15
      %s280 = smul.addr %s279, 8
      %s281 = scalar_lea.vmem %s7, %s280
      %s282 = smul.u32 8, %s19
      %s283 = sld [smem:[#allocation4]]
      %v284 = vld [vmem:[%s3] sm:$0xff]
      %v285 = vld [vmem:[%s3 + $0x8] sm:$0xff]
      %v286 = vld [vmem:[%s3 + $0x10] sm:$0xff]
      %v287 = vld [vmem:[%s3 + $0x18] sm:$0xff]
      %v288 = vld [vmem:[%s4] sm:$0xff]
      %v289 = vld [vmem:[%s4 + $0x8] sm:$0xff]
      %v290 = vld [vmem:[%s1] sm:$0xff]
      %v291 = vld [vmem:[%s1 + $0x8] sm:$0xff]
      %v292 = vld [vmem:[%s1 + $0x10] sm:$0xff]
      %v293 = vld [vmem:[%s1 + $0x18] sm:$0xff]
      %v294 = vld [vmem:[%s1 + $0x20] sm:$0xff]
      %v295 = vld [vmem:[%s1 + $0x28] sm:$0xff]
      %v296 = vld [vmem:[%s1 + $0x30] sm:$0xff]
      %v297 = vld [vmem:[%s1 + $0x38] sm:$0xff]
      %v298 = vld [vmem:[%s2] sm:$0xff]
      %v299 = vld [vmem:[%s2 + $0x8] sm:$0xff]
      %v300 = vld [vmem:[%s5] sm:$0xff]
      %v301 = vld [vmem:[%s5 + $0x8] sm:$0xff]
      loop: start=0, step=1, limit=2
      $region49: #{tpu_custom_call.1} parent=47 // loop_pre_header
        _
      $region50: #{tpu_custom_call.1} parent=47 // loop_header
        %s303 = sphi 0, %s307
        %p304 = scmp.ge.s32.totalorder %s303, 2
      $region51: #{tpu_custom_call.1} parent=47 // loop_header_branch
        %306 = sbr.rel (%p304) target = $region55
      $region52: #{tpu_custom_call.1} parent=47 // loop_body
        %s308 = smul.u32 %s303, 32
        %s309 = scalar_lea.vmem %s275, %s308
        %v310 = vld [vmem:[%s309] sm:$0xff]
        %v311 = vld [vmem:[%s309 + $0x8] sm:$0xff]
        %v312 = vld [vmem:[%s309 + $0x10] sm:$0xff]
        %v313 = vld [vmem:[%s309 + $0x18] sm:$0xff]
        %vm314 = vcmask 523264
        %v316 = vsel %vm314, %v310, 0
        %v319 = vsel %vm314, %v311, 0
        %v322 = vsel %vm314, %v312, 0
        %v325 = vsel %vm314, %v313, 0
        %327 = vmatprep.subr.mxu0 0.0
        %328 = vmatpush1.msra.mxu0 %v290
        %329 = vmatprep.subr.mxu0 0.0
        %330 = vmatpush1.msra.mxu0 %v291
        %331 = vmatprep.subr.mxu0 0.0
        %332 = vmatpush1.msra.mxu0 %v292
        %333 = vmatprep.subr.mxu0 0.0
        %334 = vmatpush1.msra.mxu0 %v293
        %335 = vmatprep.subr.mxu0 0.0
        %336 = vmatpush1.msra.mxu0 %v294
        %337 = vmatprep.subr.mxu0 0.0
        %338 = vmatpush1.msra.mxu0 %v295
        %339 = vmatprep.subr.mxu0 0.0
        %340 = vmatpush1.msra.mxu0 %v296
        %341 = vmatprep.subr.mxu0 0.0
        %342 = vmatpush1.msra.mxu0 %v297
        %343 = vmatprep.subr.mxu0 0.0
        %344 = vmatpush1.msra.mxu0 0.0
        %345 = vmatprep.subr.mxu0 0.0
        %346 = vmatpush1.msra.mxu0 0.0
        %347 = vmatprep.subr.mxu0 0.0
        %348 = vmatpush1.msra.mxu0 0.0
        %349 = vmatprep.subr.mxu0 0.0
        %350 = vmatpush1.msra.mxu0 0.0
        %351 = vmatprep.subr.mxu0 0.0
        %352 = vmatpush1.msra.mxu0 0.0
        %353 = vmatprep.subr.mxu0 0.0
        %354 = vmatpush1.msra.mxu0 0.0
        %355 = vmatprep.subr.mxu0 0.0
        %356 = vmatpush1.msra.mxu0 0.0
        %357 = vmatprep.subr.mxu0 0.0
        %358 = vmatpush1.msra.mxu0 0.0
        %359 = vmatprep.subr.mxu0 0.0
        %360 = vmatpush1.msra.mxu0 0.0
        %361 = vmatprep.subr.mxu0 0.0
        %362 = vmatpush1.msra.mxu0 0.0
        %363 = vmatprep.subr.mxu0 0.0
        %364 = vmatpush1.msra.mxu0 0.0
        %365 = vmatprep.subr.mxu0 0.0
        %366 = vmatpush1.msra.mxu0 0.0
        %367 = vmatprep.subr.mxu0 0.0
        %368 = vmatpush1.msra.mxu0 0.0
        %369 = vmatprep.subr.mxu0 0.0
        %370 = vmatpush1.msra.mxu0 0.0
        %371 = vmatprep.subr.mxu0 0.0
        %372 = vmatpush1.msra.mxu0 0.0
        %373 = vmatprep.subr.mxu0 0.0
        %374 = vmatpush1.msra.mxu0 0.0
        %375 = vmatprep.subr.mxu0 0.0
        %376 = vmatpush1.msra.mxu0 0.0
        %377 = vmatprep.subr.mxu0 0.0
        %378 = vmatpush1.msra.mxu0 0.0
        %379 = vmatprep.subr.mxu0 0.0
        %380 = vmatpush1.msra.mxu0 0.0
        %381 = vmatprep.subr.mxu0 0.0
        %382 = vmatpush1.msra.mxu0 0.0
        %383 = vmatprep.subr.mxu0 0.0
        %384 = vmatpush1.msra.mxu0 0.0
        %385 = vmatprep.subr.mxu0 0.0
        %386 = vmatpush1.msra.mxu0 0.0
        %387 = vmatprep.subr.mxu0 0.0
        %388 = vmatpush1.msra.mxu0 0.0
        %389 = vmatprep.subr.mxu0 0.0
        %390 = vmatpush1.msra.mxu0 0.0
        %391 = vmatprep.mubr.f32.mxu0 0.0
        %392 = vmatmul.mubr.f32.gmra.mrb[0].mxu0 %v316
        %v393 = vpop.f32.mrb[0].mxu0
        %v394 = vadd.f32 0.0, %v393
        %v395 = vpop.f32.mrb[0].mxu0
        %396 = vmatprep.mubr.f32.mxu0 0.0
        %397 = vmatmul.mubr.f32.gmra.mrb[0].mxu0 %v319
        %v398 = vpop.f32.mrb[0].mxu0
        %v399 = vadd.f32 0.0, %v398
        %v400 = vpop.f32.mrb[0].mxu0
        %401 = vmatprep.mubr.f32.mxu0 0.0
        %402 = vmatmul.mubr.f32.gmra.mrb[0].mxu0 %v322
        %v403 = vpop.f32.mrb[0].mxu0
        %v404 = vadd.f32 0.0, %v403
        %v405 = vpop.f32.mrb[0].mxu0
        %406 = vmatprep.mubr.f32.mxu0 0.0
        %407 = vmatmul.mubr.f32.gmra.mrb[0].mxu0 %v325
        %v408 = vpop.f32.mrb[0].mxu0
        %v409 = vadd.f32 0.0, %v408
        %v410 = vpop.f32.mrb[0].mxu0
        %411 = vdwg.mxu0
        %413 = vset.pattern.permute.xlu0 0
        %414 = vperm.xlu0 %413, %v284
        %v415 = vpop.permute.xlu0 %414
        %418 = vset.pattern.permute.xlu0 0
        %419 = vperm.xlu0 %418, %v285
        %v420 = vpop.permute.xlu0 %419
        %423 = vset.pattern.permute.xlu0 0
        %424 = vperm.xlu0 %423, %v286
        %v425 = vpop.permute.xlu0 %424
        %428 = vset.pattern.permute.xlu0 0
        %429 = vperm.xlu0 %428, %v287
        %v430 = vpop.permute.xlu0 %429
        %v432 = vmul.f32 %v415, %v394
        %v433 = vmul.f32 %v420, %v399
        %v434 = vmul.f32 %v425, %v404
        %v435 = vmul.f32 %v430, %v409
        %vm436 = vcmask 130048
        %v437 = vsel %vm436, %v432, 0.0
        %v438 = vsel %vm436, %v433, 0.0
        %v439 = vadd.f32 %v437, %v438
        %v440 = vsel %vm436, %v434, 0.0
        %v441 = vadd.f32 %v439, %v440
        %v442 = vsel %vm436, %v435, 0.0
        %v443 = vadd.f32 %v441, %v442
        %v444 = vrot.slane %v443, 4
        %v445 = vadd.f32 %v443, %v444
        %v446 = vrot.slane %v445, 2
        %v447 = vadd.f32 %v445, %v446
        %v448 = vrot.slane %v447, 1
        %v449 = vadd.f32 %v447, %v448
        %v450 = vmul.f32 %v449, 0.125
        %v451 = vstv %s283
        %v452 = vadd.f32 %v450, %v451
        %vm453 = vcmask 517120
        %v454 = vsel %vm453, %v310, -inf
        %v455 = vrot.slane %v454, 4
        %v456 = vmax.f32 %v454, %v455
        %v457 = vrot.slane %v456, 2
        %v458 = vmax.f32 %v456, %v457
        %v459 = vrot.slane %v458, 1
        %v460 = vmax.f32 %v458, %v459
        %vm461 = vcmask 516096
        %462 = vst.msk [vmem:[#allocation2] sm:$0x1] %vm461, %v460
        %vm463 = vcmask 519170
        %v464 = vsel %vm463, %v310, -inf
        %v465 = vrot.slane %v464, 4
        %v466 = vmax.f32 %v464, %v465
        %v467 = vrot.slane %v466, 2
        %v468 = vmax.f32 %v466, %v467
        %v469 = vrot.slane %v468, 1
        %v470 = vmax.f32 %v468, %v469
        %471 = vst.msk [vmem:[#allocation2 + $0x1] sm:$0x1] %vm461, %v470
        %vm472 = vcmask 521220
        %v473 = vsel %vm472, %v310, -inf
        %v474 = vrot.slane %v473, 4
        %v475 = vmax.f32 %v473, %v474
        %v476 = vrot.slane %v475, 2
        %v477 = vmax.f32 %v475, %v476
        %v478 = vrot.slane %v477, 1
        %v479 = vmax.f32 %v477, %v478
        %480 = vst.msk [vmem:[#allocation2 + $0x2] sm:$0x1] %vm461, %v479
        %vm481 = vcmask 523270
        %v482 = vsel %vm481, %v310, -inf
        %v483 = vrot.slane %v482, 4
        %v484 = vmax.f32 %v482, %v483
        %v485 = vrot.slane %v484, 2
        %v486 = vmax.f32 %v484, %v485
        %v487 = vrot.slane %v486, 1
        %v488 = vmax.f32 %v486, %v487
        %489 = vst.msk [vmem:[#allocation2 + $0x3] sm:$0x1] %vm461, %v488
        %v490 = vsel %vm453, %v311, -inf
        %v491 = vrot.slane %v490, 4
        %v492 = vmax.f32 %v490, %v491
        %v493 = vrot.slane %v492, 2
        %v494 = vmax.f32 %v492, %v493
        %v495 = vrot.slane %v494, 1
        %v496 = vmax.f32 %v494, %v495
        %497 = vst.msk [vmem:[#allocation2 + $0x4] sm:$0x1] %vm461, %v496
        %v498 = vsel %vm463, %v311, -inf
        %v499 = vrot.slane %v498, 4
        %v500 = vmax.f32 %v498, %v499
        %v501 = vrot.slane %v500, 2
        %v502 = vmax.f32 %v500, %v501
        %v503 = vrot.slane %v502, 1
        %v504 = vmax.f32 %v502, %v503
        %505 = vst.msk [vmem:[#allocation2 + $0x5] sm:$0x1] %vm461, %v504
        %v506 = vsel %vm472, %v311, -inf
        %v507 = vrot.slane %v506, 4
        %v508 = vmax.f32 %v506, %v507
        %v509 = vrot.slane %v508, 2
        %v510 = vmax.f32 %v508, %v509
        %v511 = vrot.slane %v510, 1
        %v512 = vmax.f32 %v510, %v511
        %513 = vst.msk [vmem:[#allocation2 + $0x6] sm:$0x1] %vm461, %v512
        %v514 = vsel %vm481, %v311, -inf
        %v515 = vrot.slane %v514, 4
        %v516 = vmax.f32 %v514, %v515
        %v517 = vrot.slane %v516, 2
        %v518 = vmax.f32 %v516, %v517
        %v519 = vrot.slane %v518, 1
        %v520 = vmax.f32 %v518, %v519
        %521 = vst.msk [vmem:[#allocation2 + $0x7] sm:$0x1] %vm461, %v520
        %v522 = vsel %vm453, %v312, -inf
        %v523 = vrot.slane %v522, 4
        %v524 = vmax.f32 %v522, %v523
        %v525 = vrot.slane %v524, 2
        %v526 = vmax.f32 %v524, %v525
        %v527 = vrot.slane %v526, 1
        %v528 = vmax.f32 %v526, %v527
        %529 = vst.msk [vmem:[#allocation2 + $0x8] sm:$0x1] %vm461, %v528
        %v530 = vsel %vm463, %v312, -inf
        %v531 = vrot.slane %v530, 4
        %v532 = vmax.f32 %v530, %v531
        %v533 = vrot.slane %v532, 2
        %v534 = vmax.f32 %v532, %v533
        %v535 = vrot.slane %v534, 1
        %v536 = vmax.f32 %v534, %v535
        %537 = vst.msk [vmem:[#allocation2 + $0x9] sm:$0x1] %vm461, %v536
        %v538 = vsel %vm472, %v312, -inf
        %v539 = vrot.slane %v538, 4
        %v540 = vmax.f32 %v538, %v539
        %v541 = vrot.slane %v540, 2
        %v542 = vmax.f32 %v540, %v541
        %v543 = vrot.slane %v542, 1
        %v544 = vmax.f32 %v542, %v543
        %545 = vst.msk [vmem:[#allocation2 + $0xa] sm:$0x1] %vm461, %v544
        %v546 = vsel %vm481, %v312, -inf
        %v547 = vrot.slane %v546, 4
        %v548 = vmax.f32 %v546, %v547
        %v549 = vrot.slane %v548, 2
        %v550 = vmax.f32 %v548, %v549
        %v551 = vrot.slane %v550, 1
        %v552 = vmax.f32 %v550, %v551
        %553 = vst.msk [vmem:[#allocation2 + $0xb] sm:$0x1] %vm461, %v552
        %v554 = vsel %vm453, %v313, -inf
        %v555 = vrot.slane %v554, 4
        %v556 = vmax.f32 %v554, %v555
        %v557 = vrot.slane %v556, 2
        %v558 = vmax.f32 %v556, %v557
        %v559 = vrot.slane %v558, 1
        %v560 = vmax.f32 %v558, %v559
        %561 = vst.msk [vmem:[#allocation2 + $0xc] sm:$0x1] %vm461, %v560
        %v562 = vsel %vm463, %v313, -inf
        %v563 = vrot.slane %v562, 4
        %v564 = vmax.f32 %v562, %v563
        %v565 = vrot.slane %v564, 2
        %v566 = vmax.f32 %v564, %v565
        %v567 = vrot.slane %v566, 1
        %v568 = vmax.f32 %v566, %v567
        %569 = vst.msk [vmem:[#allocation2 + $0xd] sm:$0x1] %vm461, %v568
        %v570 = vsel %vm472, %v313, -inf
        %v571 = vrot.slane %v570, 4
        %v572 = vmax.f32 %v570, %v571
        %v573 = vrot.slane %v572, 2
        %v574 = vmax.f32 %v572, %v573
        %v575 = vrot.slane %v574, 1
        %v576 = vmax.f32 %v574, %v575
        %577 = vst.msk [vmem:[#allocation2 + $0xe] sm:$0x1] %vm461, %v576
        %v578 = vsel %vm481, %v313, -inf
        %v579 = vrot.slane %v578, 4
        %v580 = vmax.f32 %v578, %v579
        %v581 = vrot.slane %v580, 2
        %v582 = vmax.f32 %v580, %v581
        %v583 = vrot.slane %v582, 1
        %v584 = vmax.f32 %v582, %v583
        %585 = vst.msk [vmem:[#allocation2 + $0xf] sm:$0x1] %vm461, %v584
        %v586 = vld [vmem:[#allocation2] sm:$0xff]
        %v587 = vld [vmem:[#allocation2 + $0x8] sm:$0xff]
        %v588 = vlaneseq
        %v589 = vshrl.u32 %v588, 7
        %v590 = vsub.s32 0, %v589
        %v591 = vrot.slane %v298, %v590
        %v592 = vadd.f32 %v586, %v591
        %v593 = vadd.f32 %v587, %v591
        %v594 = vsel %vm314, %v592, -inf
        %595 = vmax.xlane.f32.xlu0 %v594
        %v596 = vpop.xlane.xlu0 %595
        %v597 = vsel %vm314, %v593, -inf
        %598 = vmax.xlane.f32.xlu0 %v597
        %v599 = vpop.xlane.xlu0 %598
        %vm600 = vcmask 7168
        %601 = vst.msk [vmem:[#allocation3] sm:$0xff] %vm600, %v596
        %602 = vst.msk [vmem:[#allocation3 + $0x8] sm:$0xff] %vm600, %v599
        %v603 = vlaneseq
        %v604 = vshrl.u32 %v603, 7
        %v605 = vsub.s32 1, %v604
        %v606 = vrot.slane %v298, %v605
        %v607 = vadd.f32 %v586, %v606
        %v608 = vadd.f32 %v587, %v606
        %v609 = vsel %vm314, %v607, -inf
        %610 = vmax.xlane.f32.xlu0 %v609
        %v611 = vpop.xlane.xlu0 %610
        %v612 = vsel %vm314, %v608, -inf
        %613 = vmax.xlane.f32.xlu0 %v612
        %v614 = vpop.xlane.xlu0 %613
        %vm615 = vcmask 15368
        %616 = vst.msk [vmem:[#allocation3] sm:$0xff] %vm615, %v611
        %617 = vst.msk [vmem:[#allocation3 + $0x8] sm:$0xff] %vm615, %v614
        %v618 = vlaneseq
        %v619 = vshrl.u32 %v618, 7
        %v620 = vsub.s32 2, %v619
        %v621 = vrot.slane %v298, %v620
        %v622 = vadd.f32 %v586, %v621
        %v623 = vadd.f32 %v587, %v621
        %v624 = vsel %vm314, %v622, -inf
        %625 = vmax.xlane.f32.xlu0 %v624
        %v626 = vpop.xlane.xlu0 %625
        %v627 = vsel %vm314, %v623, -inf
        %628 = vmax.xlane.f32.xlu0 %v627
        %v629 = vpop.xlane.xlu0 %628
        %vm630 = vcmask 23568
        %631 = vst.msk [vmem:[#allocation3] sm:$0xff] %vm630, %v626
        %632 = vst.msk [vmem:[#allocation3 + $0x8] sm:$0xff] %vm630, %v629
        %v633 = vlaneseq
        %v634 = vshrl.u32 %v633, 7
        %v635 = vsub.s32 3, %v634
        %v636 = vrot.slane %v298, %v635
        %v637 = vadd.f32 %v586, %v636
        %v638 = vadd.f32 %v587, %v636
        %v639 = vsel %vm314, %v637, -inf
        %640 = vmax.xlane.f32.xlu0 %v639
        %v641 = vpop.xlane.xlu0 %640
        %v642 = vsel %vm314, %v638, -inf
        %643 = vmax.xlane.f32.xlu0 %v642
        %v644 = vpop.xlane.xlu0 %643
        %vm645 = vcmask 31768
        %646 = vst.msk [vmem:[#allocation3] sm:$0xff] %vm645, %v641
        %647 = vst.msk [vmem:[#allocation3 + $0x8] sm:$0xff] %vm645, %v644
        %v648 = vlaneseq
        %v649 = vshrl.u32 %v648, 7
        %v650 = vsub.s32 4, %v649
        %v651 = vrot.slane %v298, %v650
        %v652 = vadd.f32 %v586, %v651
        %v653 = vadd.f32 %v587, %v651
        %v654 = vsel %vm314, %v652, -inf
        %655 = vmax.xlane.f32.xlu0 %v654
        %v656 = vpop.xlane.xlu0 %655
        %v657 = vsel %vm314, %v653, -inf
        %658 = vmax.xlane.f32.xlu0 %v657
        %v659 = vpop.xlane.xlu0 %658
        %vm660 = vcmask 39968
        %661 = vst.msk [vmem:[#allocation3] sm:$0xff] %vm660, %v656
        %662 = vst.msk [vmem:[#allocation3 + $0x8] sm:$0xff] %vm660, %v659
        %v663 = vlaneseq
        %v664 = vshrl.u32 %v663, 7
        %v665 = vsub.s32 5, %v664
        %v666 = vrot.slane %v298, %v665
        %v667 = vadd.f32 %v586, %v666
        %v668 = vadd.f32 %v587, %v666
        %v669 = vsel %vm314, %v667, -inf
        %670 = vmax.xlane.f32.xlu0 %v669
        %v671 = vpop.xlane.xlu0 %670
        %v672 = vsel %vm314, %v668, -inf
        %673 = vmax.xlane.f32.xlu0 %v672
        %v674 = vpop.xlane.xlu0 %673
        %vm675 = vcmask 48168
        %676 = vst.msk [vmem:[#allocation3] sm:$0xff] %vm675, %v671
        %677 = vst.msk [vmem:[#allocation3 + $0x8] sm:$0xff] %vm675, %v674
        %v678 = vlaneseq
        %v679 = vshrl.u32 %v678, 7
        %v680 = vsub.s32 6, %v679
        %v681 = vrot.slane %v298, %v680
        %v682 = vadd.f32 %v586, %v681
        %v683 = vadd.f32 %v587, %v681
        %v684 = vsel %vm314, %v682, -inf
        %685 = vmax.xlane.f32.xlu0 %v684
        %v686 = vpop.xlane.xlu0 %685
        %v687 = vsel %vm314, %v683, -inf
        %688 = vmax.xlane.f32.xlu0 %v687
        %v689 = vpop.xlane.xlu0 %688
        %vm690 = vcmask 56368
        %691 = vst.msk [vmem:[#allocation3] sm:$0xff] %vm690, %v686
        %692 = vst.msk [vmem:[#allocation3 + $0x8] sm:$0xff] %vm690, %v689
        %v693 = vlaneseq
        %v694 = vshrl.u32 %v693, 7
        %v695 = vsub.s32 7, %v694
        %v696 = vrot.slane %v298, %v695
        %v697 = vadd.f32 %v586, %v696
        %v698 = vadd.f32 %v587, %v696
        %v699 = vsel %vm314, %v697, -inf
        %700 = vmax.xlane.f32.xlu0 %v699
        %v701 = vpop.xlane.xlu0 %700
        %v702 = vsel %vm314, %v698, -inf
        %703 = vmax.xlane.f32.xlu0 %v702
        %v704 = vpop.xlane.xlu0 %703
        %vm705 = vcmask 64568
        %706 = vst.msk [vmem:[#allocation3] sm:$0xff] %vm705, %v701
        %707 = vst.msk [vmem:[#allocation3 + $0x8] sm:$0xff] %vm705, %v704
        %v708 = vlaneseq
        %v709 = vshrl.u32 %v708, 7
        %v710 = vsub.s32 0, %v709
        %v711 = vrot.slane %v299, %v710
        %v712 = vadd.f32 %v586, %v711
        %v713 = vadd.f32 %v587, %v711
        %v714 = vsel %vm314, %v712, -inf
        %715 = vmax.xlane.f32.xlu0 %v714
        %v716 = vpop.xlane.xlu0 %715
        %v717 = vsel %vm314, %v713, -inf
        %718 = vmax.xlane.f32.xlu0 %v717
        %v719 = vpop.xlane.xlu0 %718
        %vm720 = vcmask 72768
        %721 = vst.msk [vmem:[#allocation3] sm:$0xff] %vm720, %v716
        %722 = vst.msk [vmem:[#allocation3 + $0x8] sm:$0xff] %vm720, %v719
        %v723 = vlaneseq
        %v724 = vshrl.u32 %v723, 7
        %v725 = vsub.s32 1, %v724
        %v726 = vrot.slane %v299, %v725
        %v727 = vadd.f32 %v586, %v726
        %v728 = vadd.f32 %v587, %v726
        %v729 = vsel %vm314, %v727, -inf
        %730 = vmax.xlane.f32.xlu0 %v729
        %v731 = vpop.xlane.xlu0 %730
        %v732 = vsel %vm314, %v728, -inf
        %733 = vmax.xlane.f32.xlu0 %v732
        %v734 = vpop.xlane.xlu0 %733
        %vm735 = vcmask 80968
        %736 = vst.msk [vmem:[#allocation3] sm:$0xff] %vm735, %v731
        %737 = vst.msk [vmem:[#allocation3 + $0x8] sm:$0xff] %vm735, %v734
        %v738 = vlaneseq
        %v739 = vshrl.u32 %v738, 7
        %v740 = vsub.s32 2, %v739
        %v741 = vrot.slane %v299, %v740
        %v742 = vadd.f32 %v586, %v741
        %v743 = vadd.f32 %v587, %v741
        %v744 = vsel %vm314, %v742, -inf
        %745 = vmax.xlane.f32.xlu0 %v744
        %v746 = vpop.xlane.xlu0 %745
        %v747 = vsel %vm314, %v743, -inf
        %748 = vmax.xlane.f32.xlu0 %v747
        %v749 = vpop.xlane.xlu0 %748
        %vm750 = vcmask 89168
        %751 = vst.msk [vmem:[#allocation3] sm:$0xff] %vm750, %v746
        %752 = vst.msk [vmem:[#allocation3 + $0x8] sm:$0xff] %vm750, %v749
        %v753 = vlaneseq
        %v754 = vshrl.u32 %v753, 7
        %v755 = vsub.s32 3, %v754
        %v756 = vrot.slane %v299, %v755
        %v757 = vadd.f32 %v586, %v756
        %v758 = vadd.f32 %v587, %v756
        %v759 = vsel %vm314, %v757, -inf
        %760 = vmax.xlane.f32.xlu0 %v759
        %v761 = vpop.xlane.xlu0 %760
        %v762 = vsel %vm314, %v758, -inf
        %763 = vmax.xlane.f32.xlu0 %v762
        %v764 = vpop.xlane.xlu0 %763
        %vm765 = vcmask 97368
        %766 = vst.msk [vmem:[#allocation3] sm:$0xff] %vm765, %v761
        %767 = vst.msk [vmem:[#allocation3 + $0x8] sm:$0xff] %vm765, %v764
        %v768 = vlaneseq
        %v769 = vshrl.u32 %v768, 7
        %v770 = vsub.s32 4, %v769
        %v771 = vrot.slane %v299, %v770
        %v772 = vadd.f32 %v586, %v771
        %v773 = vadd.f32 %v587, %v771
        %v774 = vsel %vm314, %v772, -inf
        %775 = vmax.xlane.f32.xlu0 %v774
        %v776 = vpop.xlane.xlu0 %775
        %v777 = vsel %vm314, %v773, -inf
        %778 = vmax.xlane.f32.xlu0 %v777
        %v779 = vpop.xlane.xlu0 %778
        %vm780 = vcmask 105568
        %781 = vst.msk [vmem:[#allocation3] sm:$0xff] %vm780, %v776
        %782 = vst.msk [vmem:[#allocation3 + $0x8] sm:$0xff] %vm780, %v779
        %v783 = vlaneseq
        %v784 = vshrl.u32 %v783, 7
        %v785 = vsub.s32 5, %v784
        %v786 = vrot.slane %v299, %v785
        %v787 = vadd.f32 %v586, %v786
        %v788 = vadd.f32 %v587, %v786
        %v789 = vsel %vm314, %v787, -inf
        %790 = vmax.xlane.f32.xlu0 %v789
        %v791 = vpop.xlane.xlu0 %790
        %v792 = vsel %vm314, %v788, -inf
        %793 = vmax.xlane.f32.xlu0 %v792
        %v794 = vpop.xlane.xlu0 %793
        %vm795 = vcmask 113768
        %796 = vst.msk [vmem:[#allocation3] sm:$0xff] %vm795, %v791
        %797 = vst.msk [vmem:[#allocation3 + $0x8] sm:$0xff] %vm795, %v794
        %v798 = vlaneseq
        %v799 = vshrl.u32 %v798, 7
        %v800 = vsub.s32 6, %v799
        %v801 = vrot.slane %v299, %v800
        %v802 = vadd.f32 %v586, %v801
        %v803 = vadd.f32 %v587, %v801
        %v804 = vsel %vm314, %v802, -inf
        %805 = vmax.xlane.f32.xlu0 %v804
        %v806 = vpop.xlane.xlu0 %805
        %v807 = vsel %vm314, %v803, -inf
        %808 = vmax.xlane.f32.xlu0 %v807
        %v809 = vpop.xlane.xlu0 %808
        %vm810 = vcmask 121968
        %811 = vst.msk [vmem:[#allocation3] sm:$0xff] %vm810, %v806
        %812 = vst.msk [vmem:[#allocation3 + $0x8] sm:$0xff] %vm810, %v809
        %v813 = vlaneseq
        %v814 = vshrl.u32 %v813, 7
        %v815 = vsub.s32 7, %v814
        %v816 = vrot.slane %v299, %v815
        %v817 = vadd.f32 %v586, %v816
        %v818 = vadd.f32 %v587, %v816
        %v819 = vsel %vm314, %v817, -inf
        %820 = vmax.xlane.f32.xlu0 %v819
        %v821 = vpop.xlane.xlu0 %820
        %v822 = vsel %vm314, %v818, -inf
        %823 = vmax.xlane.f32.xlu0 %v822
        %v824 = vpop.xlane.xlu0 %823
        %vm825 = vcmask 130168
        %826 = vst.msk [vmem:[#allocation3] sm:$0xff] %vm825, %v821
        %827 = vst.msk [vmem:[#allocation3 + $0x8] sm:$0xff] %vm825, %v824
        %v828 = vld [vmem:[#allocation3] sm:$0xff]
        %v829 = vld [vmem:[#allocation3 + $0x8] sm:$0xff]
        %831 = vset.pattern.permute.xlu0 0
        %832 = vperm.xlu0 %831, %v288
        %v833 = vpop.permute.xlu0 %832
        %836 = vset.pattern.permute.xlu0 0
        %837 = vperm.xlu0 %836, %v289
        %v838 = vpop.permute.xlu0 %837
        %v840 = vmul.f32 %v833, %v828
        %v841 = vmul.f32 %v838, %v829
        %v842 = vsel %vm436, %v840, 0.0
        %v843 = vsel %vm436, %v841, 0.0
        %v844 = vadd.f32 %v842, %v843
        %v845 = vrot.slane %v844, 4
        %v846 = vadd.f32 %v844, %v845
        %v847 = vrot.slane %v846, 2
        %v848 = vadd.f32 %v846, %v847
        %v849 = vrot.slane %v848, 1
        %v850 = vadd.f32 %v848, %v849
        %v851 = vadd.f32 %v850, %v451
        %v852 = vmax.f32 %v452, 0.0
        %v853 = vmax.f32 %v851, 0.0
        %854 = vset.pattern.permute.xlu0 1
        %855 = vperm.xlu0 %854, %v288
        %v856 = vpop.permute.xlu0 %855
        %858 = vset.pattern.permute.xlu0 1
        %859 = vperm.xlu0 %858, %v289
        %v860 = vpop.permute.xlu0 %859
        %v862 = vmul.f32 %v856, %v852
        %v863 = vmul.f32 %v860, %v852
        %864 = vset.pattern.permute.xlu0 2
        %865 = vperm.xlu0 %864, %v288
        %v866 = vpop.permute.xlu0 %865
        %868 = vset.pattern.permute.xlu0 2
        %869 = vperm.xlu0 %868, %v289
        %v870 = vpop.permute.xlu0 %869
        %v872 = vmul.f32 %v866, %v853
        %v873 = vmul.f32 %v870, %v853
        %v874 = vadd.f32 %v862, %v872
        %v875 = vadd.f32 %v863, %v873
        %876 = vset.pattern.permute.xlu0 3
        %877 = vperm.xlu0 %876, %v288
        %v878 = vpop.permute.xlu0 %877
        %880 = vset.pattern.permute.xlu0 3
        %881 = vperm.xlu0 %880, %v289
        %v882 = vpop.permute.xlu0 %881
        %v884 = vadd.f32 %v874, %v878
        %v885 = vadd.f32 %v875, %v882
        %v887 = vsel %vm436, %v884, 0
        %v890 = vsel %vm436, %v885, 0
        %892 = vmatprep.subr.mxu0 0.0
        %893 = vmatpush1.msra.mxu0 %v300
        %894 = vmatprep.subr.mxu0 0.0
        %895 = vmatpush1.msra.mxu0 %v301
        %896 = vmatprep.subr.mxu0 0.0
        %897 = vmatpush1.msra.mxu0 0.0
        %898 = vmatprep.subr.mxu0 0.0
        %899 = vmatpush1.msra.mxu0 0.0
        %900 = vmatprep.subr.mxu0 0.0
        %901 = vmatpush1.msra.mxu0 0.0
        %902 = vmatprep.subr.mxu0 0.0
        %903 = vmatpush1.msra.mxu0 0.0
        %904 = vmatprep.subr.mxu0 0.0
        %905 = vmatpush1.msra.mxu0 0.0
        %906 = vmatprep.subr.mxu0 0.0
        %907 = vmatpush1.msra.mxu0 0.0
        %908 = vmatprep.subr.mxu0 0.0
        %909 = vmatpush1.msra.mxu0 0.0
        %910 = vmatprep.subr.mxu0 0.0
        %911 = vmatpush1.msra.mxu0 0.0
        %912 = vmatprep.subr.mxu0 0.0
        %913 = vmatpush1.msra.mxu0 0.0
        %914 = vmatprep.subr.mxu0 0.0
        %915 = vmatpush1.msra.mxu0 0.0
        %916 = vmatprep.subr.mxu0 0.0
        %917 = vmatpush1.msra.mxu0 0.0
        %918 = vmatprep.subr.mxu0 0.0
        %919 = vmatpush1.msra.mxu0 0.0
        %920 = vmatprep.subr.mxu0 0.0
        %921 = vmatpush1.msra.mxu0 0.0
        %922 = vmatprep.subr.mxu0 0.0
        %923 = vmatpush1.msra.mxu0 0.0
        %924 = vmatprep.subr.mxu0 0.0
        %925 = vmatpush1.msra.mxu0 0.0
        %926 = vmatprep.subr.mxu0 0.0
        %927 = vmatpush1.msra.mxu0 0.0
        %928 = vmatprep.subr.mxu0 0.0
        %929 = vmatpush1.msra.mxu0 0.0
        %930 = vmatprep.subr.mxu0 0.0
        %931 = vmatpush1.msra.mxu0 0.0
        %932 = vmatprep.subr.mxu0 0.0
        %933 = vmatpush1.msra.mxu0 0.0
        %934 = vmatprep.subr.mxu0 0.0
        %935 = vmatpush1.msra.mxu0 0.0
        %936 = vmatprep.subr.mxu0 0.0
        %937 = vmatpush1.msra.mxu0 0.0
        %938 = vmatprep.subr.mxu0 0.0
        %939 = vmatpush1.msra.mxu0 0.0
        %940 = vmatprep.subr.mxu0 0.0
        %941 = vmatpush1.msra.mxu0 0.0
        %942 = vmatprep.subr.mxu0 0.0
        %943 = vmatpush1.msra.mxu0 0.0
        %944 = vmatprep.subr.mxu0 0.0
        %945 = vmatpush1.msra.mxu0 0.0
        %946 = vmatprep.subr.mxu0 0.0
        %947 = vmatpush1.msra.mxu0 0.0
        %948 = vmatprep.subr.mxu0 0.0
        %949 = vmatpush1.msra.mxu0 0.0
        %950 = vmatprep.subr.mxu0 0.0
        %951 = vmatpush1.msra.mxu0 0.0
        %952 = vmatprep.subr.mxu0 0.0
        %953 = vmatpush1.msra.mxu0 0.0
        %954 = vmatprep.subr.mxu0 0.0
        %955 = vmatpush1.msra.mxu0 0.0
        %956 = vmatprep.mubr.f32.mxu0 0.0
        %957 = vmatmul.mubr.f32.gmra.mrb[0].mxu0 %v887
        %v958 = vpop.f32.mrb[0].mxu0
        %v959 = vadd.f32 0.0, %v958
        %v960 = vpop.f32.mrb[0].mxu0
        %961 = vmatprep.mubr.f32.mxu0 0.0
        %962 = vmatmul.mubr.f32.gmra.mrb[0].mxu0 %v890
        %v963 = vpop.f32.mrb[0].mxu0
        %v964 = vadd.f32 0.0, %v963
        %v965 = vpop.f32.mrb[0].mxu0
        %966 = vdwg.mxu0
        %v967 = vsub.f32 0.0, %v959
        %v968 = vsub.f32 0.0, %v964
        %v969 = vmul.f32 %v967, 1.442695
        %v970 = vpow.pop %v969
        %v971 = vmul.f32 %v968, 1.442695
        %v972 = vpow.pop %v971
        %v973 = vadd.f32 %v970, 1.0
        %v974 = vadd.f32 %v972, 1.0
        %v975 = vrcp.pop %v973
        %v976 = vrcp.pop %v974
        %v977 = vadd.f32 %v975, 1.0
        %v978 = vadd.f32 %v976, 1.0
        %s979 = scalar_lea.vmem %s275, %s308
        %v980 = vld [vmem:[%s979] sm:$0x3]
        %v981 = vlaneseq
        %v982 = vshrl.u32 %v981, 7
        %v983 = vsub.s32 0, %v982
        %v984 = vrot.slane %v977, %v983
        %v985 = vmul.f32 %v980, %v984
        %s986 = scalar_lea.vmem %s281, %s308
        %987 = vst.msk [vmem:[%s986] sm:$0x3] %vm453, %v985
        %s988 = sadd.s32 %s308, 2
        %s989 = scalar_lea.vmem %s275, %s988
        %v990 = vld [vmem:[%s989] sm:$0x3]
        %v991 = vlaneseq
        %v992 = vshrl.u32 %v991, 7
        %v993 = vsub.s32 1, %v992
        %v994 = vrot.slane %v977, %v993
        %v995 = vmul.f32 %v990, %v994
        %s996 = scalar_lea.vmem %s281, %s988
        %997 = vst.msk [vmem:[%s996] sm:$0x3] %vm453, %v995
        %s998 = sadd.s32 %s308, 4
        %s999 = scalar_lea.vmem %s275, %s998
        %v1000 = vld [vmem:[%s999] sm:$0x3]
        %v1001 = vlaneseq
        %v1002 = vshrl.u32 %v1001, 7
        %v1003 = vsub.s32 2, %v1002
        %v1004 = vrot.slane %v977, %v1003
        %v1005 = vmul.f32 %v1000, %v1004
        %s1006 = scalar_lea.vmem %s281, %s998
        %1007 = vst.msk [vmem:[%s1006] sm:$0x3] %vm453, %v1005
        %s1008 = sadd.s32 %s308, 6
        %s1009 = scalar_lea.vmem %s275, %s1008
        %v1010 = vld [vmem:[%s1009] sm:$0x3]
        %v1011 = vlaneseq
        %v1012 = vshrl.u32 %v1011, 7
        %v1013 = vsub.s32 3, %v1012
        %v1014 = vrot.slane %v977, %v1013
        %v1015 = vmul.f32 %v1010, %v1014
        %s1016 = scalar_lea.vmem %s281, %s1008
        %1017 = vst.msk [vmem:[%s1016] sm:$0x3] %vm453, %v1015
        %s1018 = sadd.s32 %s308, 8
        %s1019 = scalar_lea.vmem %s275, %s1018
        %v1020 = vld [vmem:[%s1019] sm:$0x3]
        %v1021 = vlaneseq
        %v1022 = vshrl.u32 %v1021, 7
        %v1023 = vsub.s32 4, %v1022
        %v1024 = vrot.slane %v977, %v1023
        %v1025 = vmul.f32 %v1020, %v1024
        %s1026 = scalar_lea.vmem %s281, %s1018
        %1027 = vst.msk [vmem:[%s1026] sm:$0x3] %vm453, %v1025
        %s1028 = sadd.s32 %s308, 10
        %s1029 = scalar_lea.vmem %s275, %s1028
        %v1030 = vld [vmem:[%s1029] sm:$0x3]
        %v1031 = vlaneseq
        %v1032 = vshrl.u32 %v1031, 7
        %v1033 = vsub.s32 5, %v1032
        %v1034 = vrot.slane %v977, %v1033
        %v1035 = vmul.f32 %v1030, %v1034
        %s1036 = scalar_lea.vmem %s281, %s1028
        %1037 = vst.msk [vmem:[%s1036] sm:$0x3] %vm453, %v1035
        %s1038 = sadd.s32 %s308, 12
        %s1039 = scalar_lea.vmem %s275, %s1038
        %v1040 = vld [vmem:[%s1039] sm:$0x3]
        %v1041 = vlaneseq
        %v1042 = vshrl.u32 %v1041, 7
        %v1043 = vsub.s32 6, %v1042
        %v1044 = vrot.slane %v977, %v1043
        %v1045 = vmul.f32 %v1040, %v1044
        %s1046 = scalar_lea.vmem %s281, %s1038
        %1047 = vst.msk [vmem:[%s1046] sm:$0x3] %vm453, %v1045
        %s1048 = sadd.s32 %s308, 14
        %s1049 = scalar_lea.vmem %s275, %s1048
        %v1050 = vld [vmem:[%s1049] sm:$0x3]
        %v1051 = vlaneseq
        %v1052 = vshrl.u32 %v1051, 7
        %v1053 = vsub.s32 7, %v1052
        %v1054 = vrot.slane %v977, %v1053
        %v1055 = vmul.f32 %v1050, %v1054
        %s1056 = scalar_lea.vmem %s281, %s1048
        %1057 = vst.msk [vmem:[%s1056] sm:$0x3] %vm453, %v1055
        %s1058 = sadd.s32 %s308, 16
        %s1059 = scalar_lea.vmem %s275, %s1058
        %v1060 = vld [vmem:[%s1059] sm:$0x3]
        %v1061 = vlaneseq
        %v1062 = vshrl.u32 %v1061, 7
        %v1063 = vsub.s32 0, %v1062
        %v1064 = vrot.slane %v978, %v1063
        %v1065 = vmul.f32 %v1060, %v1064
        %s1066 = scalar_lea.vmem %s281, %s1058
        %1067 = vst.msk [vmem:[%s1066] sm:$0x3] %vm453, %v1065
        %s1068 = sadd.s32 %s308, 18
        %s1069 = scalar_lea.vmem %s275, %s1068
        %v1070 = vld [vmem:[%s1069] sm:$0x3]
        %v1071 = vlaneseq
        %v1072 = vshrl.u32 %v1071, 7
        %v1073 = vsub.s32 1, %v1072
        %v1074 = vrot.slane %v978, %v1073
        %v1075 = vmul.f32 %v1070, %v1074
        %s1076 = scalar_lea.vmem %s281, %s1068
        %1077 = vst.msk [vmem:[%s1076] sm:$0x3] %vm453, %v1075
        %s1078 = sadd.s32 %s308, 20
        %s1079 = scalar_lea.vmem %s275, %s1078
        %v1080 = vld [vmem:[%s1079] sm:$0x3]
        %v1081 = vlaneseq
        %v1082 = vshrl.u32 %v1081, 7
        %v1083 = vsub.s32 2, %v1082
        %v1084 = vrot.slane %v978, %v1083
        %v1085 = vmul.f32 %v1080, %v1084
        %s1086 = scalar_lea.vmem %s281, %s1078
        %1087 = vst.msk [vmem:[%s1086] sm:$0x3] %vm453, %v1085
        %s1088 = sadd.s32 %s308, 22
        %s1089 = scalar_lea.vmem %s275, %s1088
        %v1090 = vld [vmem:[%s1089] sm:$0x3]
        %v1091 = vlaneseq
        %v1092 = vshrl.u32 %v1091, 7
        %v1093 = vsub.s32 3, %v1092
        %v1094 = vrot.slane %v978, %v1093
        %v1095 = vmul.f32 %v1090, %v1094
        %s1096 = scalar_lea.vmem %s281, %s1088
        %1097 = vst.msk [vmem:[%s1096] sm:$0x3] %vm453, %v1095
        %s1098 = sadd.s32 %s308, 24
        %s1099 = scalar_lea.vmem %s275, %s1098
        %v1100 = vld [vmem:[%s1099] sm:$0x3]
        %v1101 = vlaneseq
        %v1102 = vshrl.u32 %v1101, 7
        %v1103 = vsub.s32 4, %v1102
        %v1104 = vrot.slane %v978, %v1103
        %v1105 = vmul.f32 %v1100, %v1104
        %s1106 = scalar_lea.vmem %s281, %s1098
        %1107 = vst.msk [vmem:[%s1106] sm:$0x3] %vm453, %v1105
        %s1108 = sadd.s32 %s308, 26
        %s1109 = scalar_lea.vmem %s275, %s1108
        %v1110 = vld [vmem:[%s1109] sm:$0x3]
        %v1111 = vlaneseq
        %v1112 = vshrl.u32 %v1111, 7
        %v1113 = vsub.s32 5, %v1112
        %v1114 = vrot.slane %v978, %v1113
        %v1115 = vmul.f32 %v1110, %v1114
        %s1116 = scalar_lea.vmem %s281, %s1108
        %1117 = vst.msk [vmem:[%s1116] sm:$0x3] %vm453, %v1115
        %s1118 = sadd.s32 %s308, 28
        %s1119 = scalar_lea.vmem %s275, %s1118
        %v1120 = vld [vmem:[%s1119] sm:$0x3]
        %v1121 = vlaneseq
        %v1122 = vshrl.u32 %v1121, 7
        %v1123 = vsub.s32 6, %v1122
        %v1124 = vrot.slane %v978, %v1123
        %v1125 = vmul.f32 %v1120, %v1124
        %s1126 = scalar_lea.vmem %s281, %s1118
        %1127 = vst.msk [vmem:[%s1126] sm:$0x3] %vm453, %v1125
        %s1128 = sadd.s32 %s308, 30
        %s1129 = scalar_lea.vmem %s275, %s1128
        %v1130 = vld [vmem:[%s1129] sm:$0x3]
        %v1131 = vlaneseq
        %v1132 = vshrl.u32 %v1131, 7
        %v1133 = vsub.s32 7, %v1132
        %v1134 = vrot.slane %v978, %v1133
        %v1135 = vmul.f32 %v1130, %v1134
        %s1136 = scalar_lea.vmem %s281, %s1128
        %1137 = vst.msk [vmem:[%s1136] sm:$0x3] %vm453, %v1135
      $region53: #{tpu_custom_call.1} parent=47 // loop_footer
        %s307 = sadd.s32 1, %s303
      $region54: #{tpu_custom_call.1} parent=47 // loop_footer_branch
        %302 = sbr.rel target = $region50
      $region55: #{tpu_custom_call.1} parent=47 // loop_exit
        _
      %s1138 = smul.u32 8, %s19
      %p1139 = scmp.lt.s32.totalorder %s1138, 15
      %s1140 = scalar_select %p1139, %s1138, 15
      %s1141 = smul.addr %s1140, 8
      %s1142 = scalar_lea.vmem %s7, %s1141
      // Predicated region
      $region56: #{tpu_custom_call.1} parent=47 // pred_check
        %p1143 = pneg %p189
      $region57: #{tpu_custom_call.1} parent=47 // pred_check_branch
        %1145 = sbr.rel (%p1143) target = $region59
      $region58: #{tpu_custom_call.1} parent=47 // pred_region
        %s1146 = smul.u32 8, %s19
      $region59: #{tpu_custom_call.1} parent=47 // pred_fallthru
        _
    $region48: #{tpu_custom_call.1} parent=5 // pred_fallthru
      _
    %p1147 = scmp.le.s32.totalorder 2, %s14
    // Predicated region
    $region60: #{tpu_custom_call.1} parent=5 // pred_check
      %p1148 = pneg %p1147
    $region61: #{tpu_custom_call.1} parent=5 // pred_check_branch
      %1150 = sbr.rel (%p1148) target = $region63
    $region62: #{tpu_custom_call.1} parent=5 // pred_region
      %s1151 = ssub.s32 %s14, 2
      // Predicated region
      $region64: #{tpu_custom_call.1} parent=62 // pred_check
        %p1152 = pneg %p195
      $region65: #{tpu_custom_call.1} parent=62 // pred_check_branch
        %1154 = sbr.rel (%p1152) target = $region67
      $region66: #{tpu_custom_call.1} parent=62 // pred_region
        %s1155 = smul.u32 8, %s20
        %p1156 = scmp.lt.s32.totalorder %s1155, 15
        %s1157 = scalar_select %p1156, %s1155, 15
        %s1158 = smul.addr %s1157, 8
        %s1159 = scalar_lea.vmem %s7, %s1158
      $region67: #{tpu_custom_call.1} parent=62 // pred_fallthru
        _
    $region63: #{tpu_custom_call.1} parent=5 // pred_fallthru
      _
  $region6: #{tpu_custom_call.1} parent=0 // loop_footer
    %s18 = sadd.s32 1, %s14
  $region7: #{tpu_custom_call.1} parent=0 // loop_footer_branch
    %13 = sbr.rel target = $region3
  $region8: #{tpu_custom_call.1} parent=0 // loop_exit
    _

</llo_original>
